<compile_context>
chip_gen: v7x
topology: tpu7x:2x2x1
jax: 0.10.0
libtpu: 0.0.40
codegen_flags: <defaults>
</compile_context>

<pallas_src>
import functools
import math

import jax
import jax.numpy as jnp
from jax.experimental import pallas as pl
from jax.experimental.pallas import tpu as pltpu


# ----------------------------------------------------------------------------
# Tiling helpers
# ----------------------------------------------------------------------------
_SUBLANE = 8  # f32 sublane multiple (use 16 for bf16 inputs)


def _round_up(x, k):
    return (x + k - 1) // k * k


def _tile_m(m, max_tm=256, sublane=_SUBLANE):
    """Pick an M tile (multiple of sublane) and the padded M."""
    m_al = _round_up(m, sublane)
    tm = min(max_tm, m_al)
    return tm, _round_up(m, tm)


def _tile_h(d_hid, max_th=2048):
    """Hidden-dim tile for the MLP reduction axis (multiple of 128 or full)."""
    if d_hid <= max_th:
        return d_hid
    for th in (2048, 1024, 512, 256, 128):
        if d_hid % th == 0:
            return th
    return d_hid


def _heads_per_block(n_heads, s, d_k, itemsize, budget=6 << 20):
    """Largest divisor of n_heads whose per-step VMEM footprint fits a budget."""
    def est(hb):
        io = 3 * 2 * hb * s * d_k * itemsize   # q, k, out (double-buffered)
        scratch = 2 * hb * s * s * 4           # scores / probs in f32
        return io + scratch

    hb = n_heads
    while hb > 1 and est(hb) > budget:
        hb -= 1
        while n_heads % hb:
            hb -= 1
    return hb


def _pad_rows(x2d, m_pad):
    m = x2d.shape[0]
    if m_pad == m:
        return x2d
    return jnp.pad(x2d, ((0, m_pad - m), (0, 0)))


# ----------------------------------------------------------------------------
# Kernels
# ----------------------------------------------------------------------------
def qk_proj_kernel(x_ref, wq_ref, bq_ref, wk_ref, bk_ref, q_out, k_out):
    # x tile loaded once; two MXU matmuls; f32 accumulation; bias add in f32.
    x = x_ref[...]
    q = jnp.dot(x, wq_ref[...], preferred_element_type=jnp.float32)
    q_out[...] = (q + bq_ref[...].astype(jnp.float32)).astype(q_out.dtype)
    k = jnp.dot(x, wk_ref[...], preferred_element_type=jnp.float32)
    k_out[...] = (k + bk_ref[...].astype(jnp.float32)).astype(k_out.dtype)


def attn_kernel(q_ref, k_ref, o_ref, *, scale):
    # One (batch, head-group) slice per grid step.  V == Q (module quirk), so
    # only Q and K are streamed in; causal softmax(Q K^T / sqrt(dk)) Q.
    q = q_ref[0]          # (hb, seq, d_k)
    k = k_ref[0]
    seq = q.shape[1]
    scores = jnp.einsum('hqd,hkd->hqk', q, k,
                        preferred_element_type=jnp.float32) * scale
    row = jax.lax.broadcasted_iota(jnp.int32, (seq, seq), 0)
    col = jax.lax.broadcasted_iota(jnp.int32, (seq, seq), 1)
    keep = (col <= row)[None, :, :]
    scores = jnp.where(keep, scores, -1e9)      # matches torch masked_fill(-1e9)
    mx = jnp.max(scores, axis=-1, keepdims=True)
    probs = jnp.exp(scores - mx)
    probs = probs / jnp.sum(probs, axis=-1, keepdims=True)
    out = jnp.einsum('hqk,hkd->hqd', probs.astype(q.dtype), q,
                     preferred_element_type=jnp.float32)
    o_ref[0] = out.astype(o_ref.dtype)


def _ln_f32(x, g_ref, b_ref, eps):
    mu = jnp.mean(x, axis=-1, keepdims=True)
    cen = x - mu
    var = jnp.mean(cen * cen, axis=-1, keepdims=True)
    xn = cen * jax.lax.rsqrt(var + eps)
    return xn * g_ref[...].astype(jnp.float32) + b_ref[...].astype(jnp.float32)


def w0_add_ln_kernel(att_ref, w0_ref, b0_ref, res_ref, g_ref, b_ref, o_ref, *, eps):
    # Fused: MHA output projection + residual add + LayerNorm1.
    mha = jnp.dot(att_ref[...], w0_ref[...], preferred_element_type=jnp.float32)
    mha = mha + b0_ref[...].astype(jnp.float32)
    x = res_ref[...].astype(jnp.float32) + mha
    o_ref[...] = _ln_f32(x, g_ref, b_ref, eps).astype(o_ref.dtype)


def mlp_add_ln_kernel(x_ref, w1_ref, b1_ref, w2_ref, b2_ref, g_ref, beta_ref,
                      o_ref, acc_ref, *, eps):
    # grid = (M tiles, H tiles); hidden dim is the reduction axis (last).
    # Finalize step adds bias2 + residual (x_ref is the residual) and applies LN2.
    h_idx = pl.program_id(1)

    @pl.when(h_idx == 0)
    def _():
        acc_ref[...] = jnp.zeros_like(acc_ref)

    h = jnp.dot(x_ref[...], w1_ref[...], preferred_element_type=jnp.float32)
    h = jnp.maximum(h + b1_ref[...].astype(jnp.float32), 0.0)      # ReLU in f32
    acc_ref[...] += jnp.dot(h.astype(x_ref.dtype), w2_ref[...],
                            preferred_element_type=jnp.float32)

    @pl.when(h_idx == pl.num_programs(1) - 1)
    def _():
        ff = acc_ref[...] + b2_ref[...].astype(jnp.float32)
        x = x_ref[...].astype(jnp.float32) + ff
        o_ref[...] = _ln_f32(x, g_ref, beta_ref, eps).astype(o_ref.dtype)


# ----------------------------------------------------------------------------
# Pallas wrappers
# ----------------------------------------------------------------------------
def qk_proj(x2d, wq, bq, wk, bk):
    m, d_in = x2d.shape
    d_out = wq.shape[1]
    tm, m_pad = _tile_m(m)
    xp = _pad_rows(x2d, m_pad)
    out_sdt = jax.ShapeDtypeStruct((m_pad, d_out), x2d.dtype)
    out_spec = pl.BlockSpec((tm, d_out), lambda i: (i, 0))
    q, k = pl.pallas_call(
        qk_proj_kernel,
        out_shape=(out_sdt, out_sdt),
        grid_spec=pltpu.PrefetchScalarGridSpec(
            num_scalar_prefetch=0,
            grid=(m_pad // tm,),
            in_specs=[
                pl.BlockSpec((tm, d_in), lambda i: (i, 0)),
                pl.BlockSpec((d_in, d_out), lambda i: (0, 0)),   # weights resident
                pl.BlockSpec((1, d_out), lambda i: (0, 0)),
                pl.BlockSpec((d_in, d_out), lambda i: (0, 0)),
                pl.BlockSpec((1, d_out), lambda i: (0, 0)),
            ],
            out_specs=[out_spec, out_spec],
        ),
        compiler_params=pltpu.CompilerParams(dimension_semantics=("parallel",)),
    )(xp, wq, bq.reshape(1, d_out), wk, bk.reshape(1, d_out))
    return q[:m], k[:m]


def causal_attention(qh, kh, d_k):
    # qh/kh: (batch, n_heads, seq, d_k); V == Q, so only Q and K are passed.
    b, h, s, dk = qh.shape
    scale = 1.0 / math.sqrt(d_k)
    hb = _heads_per_block(h, s, dk, qh.dtype.itemsize)
    spec = pl.BlockSpec((1, hb, s, dk), lambda i, j: (i, j, 0, 0))
    return pl.pallas_call(
        functools.partial(attn_kernel, scale=scale),
        out_shape=jax.ShapeDtypeStruct((b, h, s, dk), qh.dtype),
        grid_spec=pltpu.PrefetchScalarGridSpec(
            num_scalar_prefetch=0,
            grid=(b, h // hb),
            in_specs=[spec, spec],
            out_specs=spec,
        ),
        compiler_params=pltpu.CompilerParams(
            dimension_semantics=("parallel", "parallel")),
    )(qh, kh)


def proj_add_ln(att2d, w0, b0, res2d, gamma, beta, eps=1e-5):
    m, d_in = att2d.shape
    d_out = w0.shape[1]
    tm, m_pad = _tile_m(m)
    ap = _pad_rows(att2d, m_pad)
    rp = _pad_rows(res2d, m_pad)
    out = pl.pallas_call(
        functools.partial(w0_add_ln_kernel, eps=eps),
        out_shape=jax.ShapeDtypeStruct((m_pad, d_out), att2d.dtype),
        grid_spec=pltpu.PrefetchScalarGridSpec(
            num_scalar_prefetch=0,
            grid=(m_pad // tm,),
            in_specs=[
                pl.BlockSpec((tm, d_in), lambda i: (i, 0)),
                pl.BlockSpec((d_in, d_out), lambda i: (0, 0)),   # weight resident
                pl.BlockSpec((1, d_out), lambda i: (0, 0)),
                pl.BlockSpec((tm, d_out), lambda i: (i, 0)),     # residual tile
                pl.BlockSpec((1, d_out), lambda i: (0, 0)),
                pl.BlockSpec((1, d_out), lambda i: (0, 0)),
            ],
            out_specs=pl.BlockSpec((tm, d_out), lambda i: (i, 0)),
        ),
        compiler_params=pltpu.CompilerParams(dimension_semantics=("parallel",)),
    )(ap, w0, b0.reshape(1, d_out), rp, gamma.reshape(1, d_out),
      beta.reshape(1, d_out))
    return out[:m]


def mlp_add_ln(x2d, w1, b1, w2, b2, gamma, beta, eps=1e-5):
    m, d_model = x2d.shape
    d_hid = w1.shape[1]
    tm, m_pad = _tile_m(m)
    th = _tile_h(d_hid)
    xp = _pad_rows(x2d, m_pad)
    out = pl.pallas_call(
        functools.partial(mlp_add_ln_kernel, eps=eps),
        out_shape=jax.ShapeDtypeStruct((m_pad, d_model), x2d.dtype),
        grid_spec=pltpu.PrefetchScalarGridSpec(
            num_scalar_prefetch=0,
            grid=(m_pad // tm, d_hid // th),
            in_specs=[
                pl.BlockSpec((tm, d_model), lambda i, h: (i, 0)),
                pl.BlockSpec((d_model, th), lambda i, h: (0, h)),
                pl.BlockSpec((1, th), lambda i, h: (0, h)),
                pl.BlockSpec((th, d_model), lambda i, h: (h, 0)),
                pl.BlockSpec((1, d_model), lambda i, h: (0, 0)),
                pl.BlockSpec((1, d_model), lambda i, h: (0, 0)),
                pl.BlockSpec((1, d_model), lambda i, h: (0, 0)),
            ],
            out_specs=pl.BlockSpec((tm, d_model), lambda i, h: (i, 0)),
            scratch_shapes=[pltpu.VMEM((tm, d_model), jnp.float32)],
        ),
        compiler_params=pltpu.CompilerParams(
            dimension_semantics=("parallel", "arbitrary")),
    )(xp, w1, b1.reshape(1, d_hid), w2, b2.reshape(1, d_model),
      gamma.reshape(1, d_model), beta.reshape(1, d_model))
    return out[:m]


# ----------------------------------------------------------------------------
# DecoderLayer forward
# ----------------------------------------------------------------------------
def decoder_layer_forward(x, p, n_heads):
    b, s, d_model = x.shape
    d_k = d_model // n_heads
    m = b * s                      # plain Python ints (jit-safe)
    x2 = x.reshape(m, d_model)

    # --- multi-head attention (causal).  Module quirk: V = Wq(x) == Q. ---
    q2, k2 = qk_proj(x2, p["wq"], p["bq"], p["wk"], p["bk"])

    def to_heads(t):
        return t.reshape(b, s, n_heads, d_k).transpose(0, 2, 1, 3)

    att = causal_attention(to_heads(q2), to_heads(k2), d_k)      # (b, h, s, dk)
    att2 = att.transpose(0, 2, 1, 3).reshape(m, d_model)

    # dropout1: inference-mode identity
    h1 = proj_add_ln(att2, p["w0"], p["b0"], x2, p["ln1_g"], p["ln1_b"])

    # --- feed-forward + dropout2 (identity) + residual + LayerNorm2 (fused) ---
    out = mlp_add_ln(h1, p["mlp_w1"], p["mlp_b1"], p["mlp_w2"], p["mlp_b2"],
                     p["ln2_g"], p["ln2_b"])
    return out.reshape(b, s, d_model)
    # TODO(synk): nn.Dropout (train-mode stochastic masking) is treated as
    # inference-mode identity; add pltpu.prng_* masking if training semantics
    # are ever required.


# ----------------------------------------------------------------------------
# Params + pure-JAX reference
# ----------------------------------------------------------------------------
def init_params(key, d_model, d_hid, dtype=jnp.float32):
    keys = jax.random.split(key, 12)

    def lin(kw, kb, fan_in, fan_out):
        bound = 1.0 / math.sqrt(fan_in)
        w = jax.random.uniform(kw, (fan_in, fan_out), dtype, -bound, bound)
        bb = jax.random.uniform(kb, (fan_out,), dtype, -bound, bound)
        return w, bb

    wq, bq = lin(keys[0], keys[1], d_model, d_model)
    wk, bk = lin(keys[2], keys[3], d_model, d_model)
    wv, bv = lin(keys[4], keys[5], d_model, d_model)   # present but unused (quirk)
    w0, b0 = lin(keys[6], keys[7], d_model, d_model)
    w1, b1 = lin(keys[8], keys[9], d_model, d_hid)
    w2, b2 = lin(keys[10], keys[11], d_hid, d_model)
    return {
        "wq": wq, "bq": bq, "wk": wk, "bk": bk, "wv": wv, "bv": bv,
        "w0": w0, "b0": b0,
        "ln1_g": jnp.ones((d_model,), dtype), "ln1_b": jnp.zeros((d_model,), dtype),
        "mlp_w1": w1, "mlp_b1": b1, "mlp_w2": w2, "mlp_b2": b2,
        "ln2_g": jnp.ones((d_model,), dtype), "ln2_b": jnp.zeros((d_model,), dtype),
    }


def _ln_ref(x, g, b, eps=1e-5):
    mu = jnp.mean(x, axis=-1, keepdims=True)
    var = jnp.mean((x - mu) ** 2, axis=-1, keepdims=True)
    return (x - mu) / jnp.sqrt(var + eps) * g + b


def ref_forward(x, p, n_heads):
    b, s, d = x.shape
    d_k = d // n_heads
    x2 = x.reshape(b * s, d)

    def heads(t):
        return t.reshape(b, s, n_heads, d_k).transpose(0, 2, 1, 3)

    q = heads(x2 @ p["wq"] + p["bq"])
    k = heads(x2 @ p["wk"] + p["bk"])
    v = heads(x2 @ p["wq"] + p["bq"])          # same quirk as the module
    scores = q @ jnp.swapaxes(k, -1, -2) / math.sqrt(d_k)
    keep = jnp.tril(jnp.ones((s, s))) > 0
    scores = jnp.where(keep, scores, -1e9)
    att = jax.nn.softmax(scores, axis=-1) @ v
    att2 = att.transpose(0, 2, 1, 3).reshape(b * s, d)
    mha = att2 @ p["w0"] + p["b0"]
    h1 = _ln_ref(x2 + mha, p["ln1_g"], p["ln1_b"])
    ff = jnp.maximum(h1 @ p["mlp_w1"] + p["mlp_b1"], 0.0) @ p["mlp_w2"] + p["mlp_b2"]
    out = _ln_ref(h1 + ff, p["ln2_g"], p["ln2_b"])
    return out.reshape(b, s, d)


# ----------------------------------------------------------------------------
if __name__ == "__main__":
    batch, seq, d_model, n_heads, d_hid = 2, 8, 32, 4, 64

    key = jax.random.PRNGKey(0)
    kx, kp = jax.random.split(key)
    x = jax.random.normal(kx, (batch, seq, d_model), dtype=jnp.float32)
    params = init_params(kp, d_model, d_hid)

    fwd = jax.jit(decoder_layer_forward, static_argnames=("n_heads",))
    y = fwd(x, params, n_heads=n_heads)
    y = jax.block_until_ready(y)

    ref = ref_forward(x, params, n_heads)
    assert y.shape == (batch, seq, d_model)
    err = float(jnp.max(jnp.abs(y - ref)))
    assert err < 1e-3, f"max abs err {err}"

    print("KERNEL_OK")
</pallas_src>

<mosaic_0001>
module attributes {stable_mosaic.version = 11 : i64} {
  func.func @qk_proj_kernel(%arg0: i32, %arg1: memref<16x32xf32, #tpu.memory_space<vmem>>, %arg2: memref<32x32xf32, #tpu.memory_space<vmem>>, %arg3: memref<1x32xf32, #tpu.memory_space<vmem>>, %arg4: memref<32x32xf32, #tpu.memory_space<vmem>>, %arg5: memref<1x32xf32, #tpu.memory_space<vmem>>, %arg6: memref<16x32xf32, #tpu.memory_space<vmem>>, %arg7: memref<16x32xf32, #tpu.memory_space<vmem>>) attributes {dimension_semantics = [#tpu.dimension_semantics<parallel>], iteration_bounds = array<i64: 1>, scalar_prefetch = 0 : i64, scratch_operands = 0 : i64, tpu.core_type = #tpu.core_type<tc>, window_params = [{transform_indices = @transform_0, window_bounds = array<i64: 16, 32>}, {pipeline_mode = #tpu.pipeline_mode<synchronous>, transform_indices = @transform_1, window_bounds = array<i64: 32, 32>}, {pipeline_mode = #tpu.pipeline_mode<synchronous>, transform_indices = @transform_2, window_bounds = array<i64: 1, 32>}, {pipeline_mode = #tpu.pipeline_mode<synchronous>, transform_indices = @transform_3, window_bounds = array<i64: 32, 32>}, {pipeline_mode = #tpu.pipeline_mode<synchronous>, transform_indices = @transform_4, window_bounds = array<i64: 1, 32>}, {transform_indices = @transform_5, window_bounds = array<i64: 16, 32>}, {transform_indices = @transform_6, window_bounds = array<i64: 16, 32>}]} {
    %c0 = arith.constant 0 : index
    %c0_0 = arith.constant 0 : index
    %0 = vector.load %arg1[%c0, %c0_0] : memref<16x32xf32, #tpu.memory_space<vmem>>, vector<16x32xf32>
    %c0_1 = arith.constant 0 : index
    %c0_2 = arith.constant 0 : index
    %1 = vector.load %arg2[%c0_1, %c0_2] : memref<32x32xf32, #tpu.memory_space<vmem>>, vector<32x32xf32>
    %cst = arith.constant dense<0.000000e+00> : vector<16x32xf32>
    %2 = tpu.matmul %0, %1, %cst {dimension_numbers = #tpu.dot_dimension_numbers<[1], [0], [0], [1], [0, 0, 1, 1], [], []>} : vector<16x32xf32>, vector<32x32xf32>, vector<16x32xf32> -> vector<16x32xf32>
    %c0_3 = arith.constant 0 : index
    %c0_4 = arith.constant 0 : index
    %3 = vector.load %arg3[%c0_3, %c0_4] : memref<1x32xf32, #tpu.memory_space<vmem>>, vector<1x32xf32>
    %4 = vector.broadcast %3 : vector<1x32xf32> to vector<16x32xf32>
    %5 = arith.addf %2, %4 : vector<16x32xf32>
    %c0_5 = arith.constant 0 : index
    %c0_6 = arith.constant 0 : index
    %6 = vector.load %arg6[%c0_5, %c0_6] : memref<16x32xf32, #tpu.memory_space<vmem>>, vector<16x32xf32>
    tpu.vector_store %arg6[%c0_5, %c0_6], %5 {strides = array<i32>} : memref<16x32xf32, #tpu.memory_space<vmem>>, vector<16x32xf32>,
    %c0_7 = arith.constant 0 : index
    %c0_8 = arith.constant 0 : index
    %7 = vector.load %arg4[%c0_7, %c0_8] : memref<32x32xf32, #tpu.memory_space<vmem>>, vector<32x32xf32>
    %cst_9 = arith.constant dense<0.000000e+00> : vector<16x32xf32>
    %8 = tpu.matmul %0, %7, %cst_9 {dimension_numbers = #tpu.dot_dimension_numbers<[1], [0], [0], [1], [0, 0, 1, 1], [], []>} : vector<16x32xf32>, vector<32x32xf32>, vector<16x32xf32> -> vector<16x32xf32>
    %c0_10 = arith.constant 0 : index
    %c0_11 = arith.constant 0 : index
    %9 = vector.load %arg5[%c0_10, %c0_11] : memref<1x32xf32, #tpu.memory_space<vmem>>, vector<1x32xf32>
    %10 = vector.broadcast %9 : vector<1x32xf32> to vector<16x32xf32>
    %11 = arith.addf %8, %10 : vector<16x32xf32>
    %c0_12 = arith.constant 0 : index
    %c0_13 = arith.constant 0 : index
    %12 = vector.load %arg7[%c0_12, %c0_13] : memref<16x32xf32, #tpu.memory_space<vmem>>, vector<16x32xf32>
    tpu.vector_store %arg7[%c0_12, %c0_13], %11 {strides = array<i32>} : memref<16x32xf32, #tpu.memory_space<vmem>>, vector<16x32xf32>,
    return
  }
  func.func @transform_0(%arg0: i32) -> (i32, i32) {
    %c0_i32 = arith.constant 0 : i32
    %c0_i32_0 = arith.constant 0 : i32
    return %arg0, %c0_i32 : i32, i32
  }
  func.func @transform_1(%arg0: i32) -> (i32, i32) {
    %c0_i32 = arith.constant 0 : i32
    %c0_i32_0 = arith.constant 0 : i32
    %c0_i32_1 = arith.constant 0 : i32
    return %c0_i32, %c0_i32_0 : i32, i32
  }
  func.func @transform_2(%arg0: i32) -> (i32, i32) {
    %c0_i32 = arith.constant 0 : i32
    %c0_i32_0 = arith.constant 0 : i32
    %c0_i32_1 = arith.constant 0 : i32
    return %c0_i32, %c0_i32_0 : i32, i32
  }
  func.func @transform_3(%arg0: i32) -> (i32, i32) {
    %c0_i32 = arith.constant 0 : i32
    %c0_i32_0 = arith.constant 0 : i32
    %c0_i32_1 = arith.constant 0 : i32
    return %c0_i32, %c0_i32_0 : i32, i32
  }
  func.func @transform_4(%arg0: i32) -> (i32, i32) {
    %c0_i32 = arith.constant 0 : i32
    %c0_i32_0 = arith.constant 0 : i32
    %c0_i32_1 = arith.constant 0 : i32
    return %c0_i32, %c0_i32_0 : i32, i32
  }
  func.func @transform_5(%arg0: i32) -> (i32, i32) {
    %c0_i32 = arith.constant 0 : i32
    %c0_i32_0 = arith.constant 0 : i32
    return %arg0, %c0_i32 : i32, i32
  }
  func.func @transform_6(%arg0: i32) -> (i32, i32) {
    %c0_i32 = arith.constant 0 : i32
    %c0_i32_0 = arith.constant 0 : i32
    return %arg0, %c0_i32 : i32, i32
  }
}

module attributes {stable_mosaic.version = 11 : i64} {
  func.func @attn_kernel(%arg0: i32, %arg1: i32, %arg2: memref<1x4x8x8xf32, #tpu.memory_space<vmem>>, %arg3: memref<1x4x8x8xf32, #tpu.memory_space<vmem>>, %arg4: memref<1x4x8x8xf32, #tpu.memory_space<vmem>>) attributes {dimension_semantics = [#tpu.dimension_semantics<parallel>, #tpu.dimension_semantics<parallel>], iteration_bounds = array<i64: 2, 1>, scalar_prefetch = 0 : i64, scratch_operands = 0 : i64, tpu.core_type = #tpu.core_type<tc>, window_params = [{transform_indices = @transform_0, window_bounds = array<i64: 1, 4, 8, 8>}, {transform_indices = @transform_1, window_bounds = array<i64: 1, 4, 8, 8>}, {transform_indices = @transform_2, window_bounds = array<i64: 1, 4, 8, 8>}]} {
    %c0 = arith.constant 0 : index
    %c0_0 = arith.constant 0 : index
    %c0_1 = arith.constant 0 : index
    %c0_2 = arith.constant 0 : index
    %0 = vector.load %arg2[%c0, %c0_0, %c0_1, %c0_2] : memref<1x4x8x8xf32, #tpu.memory_space<vmem>>, vector<1x4x8x8xf32>
    %1 = vector.shape_cast %0 : vector<1x4x8x8xf32> to vector<4x8x8xf32>
    %c0_3 = arith.constant 0 : index
    %c0_4 = arith.constant 0 : index
    %c0_5 = arith.constant 0 : index
    %c0_6 = arith.constant 0 : index
    %2 = vector.load %arg3[%c0_3, %c0_4, %c0_5, %c0_6] : memref<1x4x8x8xf32, #tpu.memory_space<vmem>>, vector<1x4x8x8xf32>
    %3 = vector.shape_cast %2 : vector<1x4x8x8xf32> to vector<4x8x8xf32>
    "tpu.trace_start"() <{level = 10 : i32, message = "hqd,hkd->hqk"}> : () -> ()
    %cst = arith.constant dense<0.000000e+00> : vector<4x8x8xf32>
    %4 = tpu.matmul %1, %3, %cst {dimension_numbers = #tpu.dot_dimension_numbers<[2], [2], [1], [1], [0, 0, 0, 1, 1, 1], [0], [0]>} : vector<4x8x8xf32>, vector<4x8x8xf32>, vector<4x8x8xf32> -> vector<4x8x8xf32>
    "tpu.trace_stop"() : () -> ()
    %cst_7 = arith.constant 0.353553385 : f32
    %5 = vector.broadcast %cst_7 : f32 to vector<4x8x8xf32>
    %6 = arith.mulf %4, %5 : vector<4x8x8xf32>
    %7 = tpu.iota {dimensions = array<i32: 0>} : vector<8x8xi32>
    %8 = tpu.iota {dimensions = array<i32: 1>} : vector<8x8xi32>
    %9 = arith.cmpi sle, %8, %7 : vector<8x8xi32>
    %10 = vector.shape_cast %9 : vector<8x8xi1> to vector<1x8x8xi1>
    %cst_8 = arith.constant -1.000000e+09 : f32
    %11 = vector.shape_cast %10 : vector<1x8x8xi1> to vector<1x8x8xi1>
    %12 = vector.broadcast %11 : vector<1x8x8xi1> to vector<4x8x8xi1>
    %13 = vector.broadcast %cst_8 : f32 to vector<4x8x8xf32>
    %14 = arith.select %12, %6, %13 : vector<4x8x8xi1>, vector<4x8x8xf32>
    %cst_9 = arith.constant dense<0xFF800000> : vector<4x8xf32>
    %15 = vector.multi_reduction <maximumf>, %14, %cst_9 [2] : vector<4x8x8xf32> to vector<4x8xf32>
    %16 = vector.shape_cast %15 : vector<4x8xf32> to vector<4x8x1xf32>
    %17 = vector.broadcast %16 : vector<4x8x1xf32> to vector<4x8x8xf32>
    %18 = arith.subf %14, %17 : vector<4x8x8xf32>
    %19 = math.exp %18 : vector<4x8x8xf32>
    %cst_10 = arith.constant dense<0.000000e+00> : vector<4x8xf32>
    %20 = vector.multi_reduction <add>, %19, %cst_10 [2] : vector<4x8x8xf32> to vector<4x8xf32>
    %21 = vector.shape_cast %20 : vector<4x8xf32> to vector<4x8x1xf32>
    %22 = vector.broadcast %21 : vector<4x8x1xf32> to vector<4x8x8xf32>
    %23 = arith.divf %19, %22 : vector<4x8x8xf32>
    "tpu.trace_start"() <{level = 10 : i32, message = "hqk,hkd->hqd"}> : () -> ()
    %cst_11 = arith.constant dense<0.000000e+00> : vector<4x8x8xf32>
    %24 = tpu.matmul %23, %1, %cst_11 {dimension_numbers = #tpu.dot_dimension_numbers<[2], [1], [1], [2], [0, 0, 0, 1, 1, 2], [0], [0]>} : vector<4x8x8xf32>, vector<4x8x8xf32>, vector<4x8x8xf32> -> vector<4x8x8xf32>
    "tpu.trace_stop"() : () -> ()
    %c0_12 = arith.constant 0 : index
    %c0_13 = arith.constant 0 : index
    %c0_14 = arith.constant 0 : index
    %c0_15 = arith.constant 0 : index
    %25 = vector.load %arg4[%c0_12, %c0_13, %c0_14, %c0_15] : memref<1x4x8x8xf32, #tpu.memory_space<vmem>>, vector<1x4x8x8xf32>
    %26 = vector.shape_cast %25 : vector<1x4x8x8xf32> to vector<4x8x8xf32>
    %27 = vector.shape_cast %24 : vector<4x8x8xf32> to vector<1x4x8x8xf32>
    tpu.vector_store %arg4[%c0_12, %c0_13, %c0_14, %c0_15], %27 {strides = array<i32>} : memref<1x4x8x8xf32, #tpu.memory_space<vmem>>, vector<1x4x8x8xf32>,
    return
  }
  func.func @transform_0(%arg0: i32, %arg1: i32) -> (i32, i32, i32, i32) {
    %c0_i32 = arith.constant 0 : i32
    %c0_i32_0 = arith.constant 0 : i32
    %c0_i32_1 = arith.constant 0 : i32
    return %arg0, %arg1, %c0_i32, %c0_i32_0 : i32, i32, i32, i32
  }
  func.func @transform_1(%arg0: i32, %arg1: i32) -> (i32, i32, i32, i32) {
    %c0_i32 = arith.constant 0 : i32
    %c0_i32_0 = arith.constant 0 : i32
    %c0_i32_1 = arith.constant 0 : i32
    return %arg0, %arg1, %c0_i32, %c0_i32_0 : i32, i32, i32, i32
  }
  func.func @transform_2(%arg0: i32, %arg1: i32) -> (i32, i32, i32, i32) {
    %c0_i32 = arith.constant 0 : i32
    %c0_i32_0 = arith.constant 0 : i32
    %c0_i32_1 = arith.constant 0 : i32
    return %arg0, %arg1, %c0_i32, %c0_i32_0 : i32, i32, i32, i32
  }
}

module attributes {stable_mosaic.version = 11 : i64} {
  func.func @mlp_add_ln_kernel(%arg0: i32, %arg1: i32, %arg2: memref<16x32xf32, #tpu.memory_space<vmem>>, %arg3: memref<32x64xf32, #tpu.memory_space<vmem>>, %arg4: memref<1x64xf32, #tpu.memory_space<vmem>>, %arg5: memref<64x32xf32, #tpu.memory_space<vmem>>, %arg6: memref<1x32xf32, #tpu.memory_space<vmem>>, %arg7: memref<1x32xf32, #tpu.memory_space<vmem>>, %arg8: memref<1x32xf32, #tpu.memory_space<vmem>>, %arg9: memref<16x32xf32, #tpu.memory_space<vmem>>, %arg10: memref<16x32xf32, #tpu.memory_space<vmem>>) attributes {dimension_semantics = [#tpu.dimension_semantics<parallel>, #tpu.dimension_semantics<arbitrary>], iteration_bounds = array<i64: 1, 1>, scalar_prefetch = 0 : i64, scratch_operands = 1 : i64, tpu.core_type = #tpu.core_type<tc>, window_params = [{transform_indices = @transform_0, window_bounds = array<i64: 16, 32>}, {transform_indices = @transform_1, window_bounds = array<i64: 32, 64>}, {transform_indices = @transform_2, window_bounds = array<i64: 1, 64>}, {transform_indices = @transform_3, window_bounds = array<i64: 64, 32>}, {pipeline_mode = #tpu.pipeline_mode<synchronous>, transform_indices = @transform_4, window_bounds = array<i64: 1, 32>}, {pipeline_mode = #tpu.pipeline_mode<synchronous>, transform_indices = @transform_5, window_bounds = array<i64: 1, 32>}, {pipeline_mode = #tpu.pipeline_mode<synchronous>, transform_indices = @transform_6, window_bounds = array<i64: 1, 32>}, {transform_indices = @transform_7, window_bounds = array<i64: 16, 32>}]} {
    %c0_i32 = arith.constant 0 : i32
    %0 = arith.cmpi eq, %arg1, %c0_i32 : i32
    %1 = arith.extui %0 : i1 to i32
    %c0_i32_0 = arith.constant 0 : i32
    %2 = arith.cmpi ne, %1, %c0_i32_0 : i32
    scf.if %2 {
      %cst_16 = arith.constant 0.000000e+00 : f32
      %19 = vector.broadcast %cst_16 : f32 to vector<16x32xf32>
      %c0_17 = arith.constant 0 : index
      %c0_18 = arith.constant 0 : index
      %20 = vector.load %arg10[%c0_17, %c0_18] : memref<16x32xf32, #tpu.memory_space<vmem>>, vector<16x32xf32>
      tpu.vector_store %arg10[%c0_17, %c0_18], %19 {strides = array<i32>} : memref<16x32xf32, #tpu.memory_space<vmem>>, vector<16x32xf32>,
    } else {
    }
    %c0 = arith.constant 0 : index
    %c0_1 = arith.constant 0 : index
    %3 = vector.load %arg2[%c0, %c0_1] : memref<16x32xf32, #tpu.memory_space<vmem>>, vector<16x32xf32>
    %c0_2 = arith.constant 0 : index
    %c0_3 = arith.constant 0 : index
    %4 = vector.load %arg3[%c0_2, %c0_3] : memref<32x64xf32, #tpu.memory_space<vmem>>, vector<32x64xf32>
    %cst = arith.constant dense<0.000000e+00> : vector<16x64xf32>
    %5 = tpu.matmul %3, %4, %cst {dimension_numbers = #tpu.dot_dimension_numbers<[1], [0], [0], [1], [0, 0, 1, 1], [], []>} : vector<16x32xf32>, vector<32x64xf32>, vector<16x64xf32> -> vector<16x64xf32>
    %c0_4 = arith.constant 0 : index
    %c0_5 = arith.constant 0 : index
    %6 = vector.load %arg4[%c0_4, %c0_5] : memref<1x64xf32, #tpu.memory_space<vmem>>, vector<1x64xf32>
    %7 = vector.broadcast %6 : vector<1x64xf32> to vector<16x64xf32>
    %8 = arith.addf %5, %7 : vector<16x64xf32>
    %cst_6 = arith.constant 0.000000e+00 : f32
    %9 = vector.broadcast %cst_6 : f32 to vector<16x64xf32>
    %10 = arith.maximumf %8, %9 : vector<16x64xf32>
    %c0_7 = arith.constant 0 : index
    %c0_8 = arith.constant 0 : index
    %11 = vector.load %arg10[%c0_7, %c0_8] : memref<16x32xf32, #tpu.memory_space<vmem>>, vector<16x32xf32>
    %c0_9 = arith.constant 0 : index
    %c0_10 = arith.constant 0 : index
    %12 = vector.load %arg5[%c0_9, %c0_10] : memref<64x32xf32, #tpu.memory_space<vmem>>, vector<64x32xf32>
    %cst_11 = arith.constant dense<0.000000e+00> : vector<16x32xf32>
    %13 = tpu.matmul %10, %12, %cst_11 {dimension_numbers = #tpu.dot_dimension_numbers<[1], [0], [0], [1], [0, 0, 1, 1], [], []>} : vector<16x64xf32>, vector<64x32xf32>, vector<16x32xf32> -> vector<16x32xf32>
    %14 = arith.addf %11, %13 : vector<16x32xf32>
    %c0_12 = arith.constant 0 : index
    %c0_13 = arith.constant 0 : index
    %15 = vector.load %arg10[%c0_12, %c0_13] : memref<16x32xf32, #tpu.memory_space<vmem>>, vector<16x32xf32>
    tpu.vector_store %arg10[%c0_12, %c0_13], %14 {strides = array<i32>} : memref<16x32xf32, #tpu.memory_space<vmem>>, vector<16x32xf32>,
    %c0_i32_14 = arith.constant 0 : i32
    %16 = arith.cmpi eq, %arg1, %c0_i32_14 : i32
    %17 = arith.extui %16 : i1 to i32
    %c0_i32_15 = arith.constant 0 : i32
    %18 = arith.cmpi ne, %17, %c0_i32_15 : i32
    scf.if %18 {
      %c0_16 = arith.constant 0 : index
      %c0_17 = arith.constant 0 : index
      %19 = vector.load %arg10[%c0_16, %c0_17] : memref<16x32xf32, #tpu.memory_space<vmem>>, vector<16x32xf32>
      %c0_18 = arith.constant 0 : index
      %c0_19 = arith.constant 0 : index
      %20 = vector.load %arg6[%c0_18, %c0_19] : memref<1x32xf32, #tpu.memory_space<vmem>>, vector<1x32xf32>
      %21 = vector.broadcast %20 : vector<1x32xf32> to vector<16x32xf32>
      %22 = arith.addf %19, %21 : vector<16x32xf32>
      %c0_20 = arith.constant 0 : index
      %c0_21 = arith.constant 0 : index
      %23 = vector.load %arg2[%c0_20, %c0_21] : memref<16x32xf32, #tpu.memory_space<vmem>>, vector<16x32xf32>
      %24 = arith.addf %23, %22 : vector<16x32xf32>
      %cst_22 = arith.constant dense<0.000000e+00> : vector<16xf32>
      %25 = vector.multi_reduction <add>, %24, %cst_22 [1] : vector<16x32xf32> to vector<16xf32>
      %26 = vector.shape_cast %25 : vector<16xf32> to vector<16x1xf32>
      %cst_23 = arith.constant 3.200000e+01 : f32
      %27 = vector.broadcast %cst_23 : f32 to vector<16x1xf32>
      %28 = arith.divf %26, %27 : vector<16x1xf32>
      %29 = vector.broadcast %28 : vector<16x1xf32> to vector<16x32xf32>
      %30 = arith.subf %24, %29 : vector<16x32xf32>
      %31 = arith.mulf %30, %30 : vector<16x32xf32>
      %cst_24 = arith.constant dense<0.000000e+00> : vector<16xf32>
      %32 = vector.multi_reduction <add>, %31, %cst_24 [1] : vector<16x32xf32> to vector<16xf32>
      %33 = vector.shape_cast %32 : vector<16xf32> to vector<16x1xf32>
      %cst_25 = arith.constant 3.200000e+01 : f32
      %34 = vector.broadcast %cst_25 : f32 to vector<16x1xf32>
      %35 = arith.divf %33, %34 : vector<16x1xf32>
      %cst_26 = arith.constant 9.99999974E-6 : f32
      %36 = vector.broadcast %cst_26 : f32 to vector<16x1xf32>
      %37 = arith.addf %35, %36 : vector<16x1xf32>
      %38 = math.rsqrt %37 : vector<16x1xf32>
      %39 = vector.broadcast %38 : vector<16x1xf32> to vector<16x32xf32>
      %40 = arith.mulf %30, %39 : vector<16x32xf32>
      %c0_27 = arith.constant 0 : index
      %c0_28 = arith.constant 0 : index
      %41 = vector.load %arg7[%c0_27, %c0_28] : memref<1x32xf32, #tpu.memory_space<vmem>>, vector<1x32xf32>
      %42 = vector.broadcast %41 : vector<1x32xf32> to vector<16x32xf32>
      %43 = arith.mulf %40, %42 : vector<16x32xf32>
      %c0_29 = arith.constant 0 : index
      %c0_30 = arith.constant 0 : index
      %44 = vector.load %arg8[%c0_29, %c0_30] : memref<1x32xf32, #tpu.memory_space<vmem>>, vector<1x32xf32>
      %45 = vector.broadcast %44 : vector<1x32xf32> to vector<16x32xf32>
      %46 = arith.addf %43, %45 : vector<16x32xf32>
      %c0_31 = arith.constant 0 : index
      %c0_32 = arith.constant 0 : index
      %47 = vector.load %arg9[%c0_31, %c0_32] : memref<16x32xf32, #tpu.memory_space<vmem>>, vector<16x32xf32>
      tpu.vector_store %arg9[%c0_31, %c0_32], %46 {strides = array<i32>} : memref<16x32xf32, #tpu.memory_space<vmem>>, vector<16x32xf32>,
    } else {
    }
    return
  }
  func.func @transform_0(%arg0: i32, %arg1: i32) -> (i32, i32) {
    %c0_i32 = arith.constant 0 : i32
    %c0_i32_0 = arith.constant 0 : i32
    return %arg0, %c0_i32 : i32, i32
  }
  func.func @transform_1(%arg0: i32, %arg1: i32) -> (i32, i32) {
    %c0_i32 = arith.constant 0 : i32
    %c0_i32_0 = arith.constant 0 : i32
    return %c0_i32, %arg1 : i32, i32
  }
  func.func @transform_2(%arg0: i32, %arg1: i32) -> (i32, i32) {
    %c0_i32 = arith.constant 0 : i32
    %c0_i32_0 = arith.constant 0 : i32
    return %c0_i32, %arg1 : i32, i32
  }
  func.func @transform_3(%arg0: i32, %arg1: i32) -> (i32, i32) {
    %c0_i32 = arith.constant 0 : i32
    %c0_i32_0 = arith.constant 0 : i32
    return %arg1, %c0_i32 : i32, i32
  }
  func.func @transform_4(%arg0: i32, %arg1: i32) -> (i32, i32) {
    %c0_i32 = arith.constant 0 : i32
    %c0_i32_0 = arith.constant 0 : i32
    %c0_i32_1 = arith.constant 0 : i32
    return %c0_i32, %c0_i32_0 : i32, i32
  }
  func.func @transform_5(%arg0: i32, %arg1: i32) -> (i32, i32) {
    %c0_i32 = arith.constant 0 : i32
    %c0_i32_0 = arith.constant 0 : i32
    %c0_i32_1 = arith.constant 0 : i32
    return %c0_i32, %c0_i32_0 : i32, i32
  }
  func.func @transform_6(%arg0: i32, %arg1: i32) -> (i32, i32) {
    %c0_i32 = arith.constant 0 : i32
    %c0_i32_0 = arith.constant 0 : i32
    %c0_i32_1 = arith.constant 0 : i32
    return %c0_i32, %c0_i32_0 : i32, i32
  }
  func.func @transform_7(%arg0: i32, %arg1: i32) -> (i32, i32) {
    %c0_i32 = arith.constant 0 : i32
    %c0_i32_0 = arith.constant 0 : i32
    return %arg0, %c0_i32 : i32, i32
  }
}

module attributes {stable_mosaic.version = 11 : i64} {
  func.func @w0_add_ln_kernel(%arg0: i32, %arg1: memref<16x32xf32, #tpu.memory_space<vmem>>, %arg2: memref<32x32xf32, #tpu.memory_space<vmem>>, %arg3: memref<1x32xf32, #tpu.memory_space<vmem>>, %arg4: memref<16x32xf32, #tpu.memory_space<vmem>>, %arg5: memref<1x32xf32, #tpu.memory_space<vmem>>, %arg6: memref<1x32xf32, #tpu.memory_space<vmem>>, %arg7: memref<16x32xf32, #tpu.memory_space<vmem>>) attributes {dimension_semantics = [#tpu.dimension_semantics<parallel>], iteration_bounds = array<i64: 1>, scalar_prefetch = 0 : i64, scratch_operands = 0 : i64, tpu.core_type = #tpu.core_type<tc>, window_params = [{transform_indices = @transform_0, window_bounds = array<i64: 16, 32>}, {pipeline_mode = #tpu.pipeline_mode<synchronous>, transform_indices = @transform_1, window_bounds = array<i64: 32, 32>}, {pipeline_mode = #tpu.pipeline_mode<synchronous>, transform_indices = @transform_2, window_bounds = array<i64: 1, 32>}, {transform_indices = @transform_3, window_bounds = array<i64: 16, 32>}, {pipeline_mode = #tpu.pipeline_mode<synchronous>, transform_indices = @transform_4, window_bounds = array<i64: 1, 32>}, {pipeline_mode = #tpu.pipeline_mode<synchronous>, transform_indices = @transform_5, window_bounds = array<i64: 1, 32>}, {transform_indices = @transform_6, window_bounds = array<i64: 16, 32>}]} {
    %c0 = arith.constant 0 : index
    %c0_0 = arith.constant 0 : index
    %0 = vector.load %arg1[%c0, %c0_0] : memref<16x32xf32, #tpu.memory_space<vmem>>, vector<16x32xf32>
    %c0_1 = arith.constant 0 : index
    %c0_2 = arith.constant 0 : index
    %1 = vector.load %arg2[%c0_1, %c0_2] : memref<32x32xf32, #tpu.memory_space<vmem>>, vector<32x32xf32>
    %cst = arith.constant dense<0.000000e+00> : vector<16x32xf32>
    %2 = tpu.matmul %0, %1, %cst {dimension_numbers = #tpu.dot_dimension_numbers<[1], [0], [0], [1], [0, 0, 1, 1], [], []>} : vector<16x32xf32>, vector<32x32xf32>, vector<16x32xf32> -> vector<16x32xf32>
    %c0_3 = arith.constant 0 : index
    %c0_4 = arith.constant 0 : index
    %3 = vector.load %arg3[%c0_3, %c0_4] : memref<1x32xf32, #tpu.memory_space<vmem>>, vector<1x32xf32>
    %4 = vector.broadcast %3 : vector<1x32xf32> to vector<16x32xf32>
    %5 = arith.addf %2, %4 : vector<16x32xf32>
    %c0_5 = arith.constant 0 : index
    %c0_6 = arith.constant 0 : index
    %6 = vector.load %arg4[%c0_5, %c0_6] : memref<16x32xf32, #tpu.memory_space<vmem>>, vector<16x32xf32>
    %7 = arith.addf %6, %5 : vector<16x32xf32>
    %cst_7 = arith.constant dense<0.000000e+00> : vector<16xf32>
    %8 = vector.multi_reduction <add>, %7, %cst_7 [1] : vector<16x32xf32> to vector<16xf32>
    %9 = vector.shape_cast %8 : vector<16xf32> to vector<16x1xf32>
    %cst_8 = arith.constant 3.200000e+01 : f32
    %10 = vector.broadcast %cst_8 : f32 to vector<16x1xf32>
    %11 = arith.divf %9, %10 : vector<16x1xf32>
    %12 = vector.broadcast %11 : vector<16x1xf32> to vector<16x32xf32>
    %13 = arith.subf %7, %12 : vector<16x32xf32>
    %14 = arith.mulf %13, %13 : vector<16x32xf32>
    %cst_9 = arith.constant dense<0.000000e+00> : vector<16xf32>
    %15 = vector.multi_reduction <add>, %14, %cst_9 [1] : vector<16x32xf32> to vector<16xf32>
    %16 = vector.shape_cast %15 : vector<16xf32> to vector<16x1xf32>
    %cst_10 = arith.constant 3.200000e+01 : f32
    %17 = vector.broadcast %cst_10 : f32 to vector<16x1xf32>
    %18 = arith.divf %16, %17 : vector<16x1xf32>
    %cst_11 = arith.constant 9.99999974E-6 : f32
    %19 = vector.broadcast %cst_11 : f32 to vector<16x1xf32>
    %20 = arith.addf %18, %19 : vector<16x1xf32>
    %21 = math.rsqrt %20 : vector<16x1xf32>
    %22 = vector.broadcast %21 : vector<16x1xf32> to vector<16x32xf32>
    %23 = arith.mulf %13, %22 : vector<16x32xf32>
    %c0_12 = arith.constant 0 : index
    %c0_13 = arith.constant 0 : index
    %24 = vector.load %arg5[%c0_12, %c0_13] : memref<1x32xf32, #tpu.memory_space<vmem>>, vector<1x32xf32>
    %25 = vector.broadcast %24 : vector<1x32xf32> to vector<16x32xf32>
    %26 = arith.mulf %23, %25 : vector<16x32xf32>
    %c0_14 = arith.constant 0 : index
    %c0_15 = arith.constant 0 : index
    %27 = vector.load %arg6[%c0_14, %c0_15] : memref<1x32xf32, #tpu.memory_space<vmem>>, vector<1x32xf32>
    %28 = vector.broadcast %27 : vector<1x32xf32> to vector<16x32xf32>
    %29 = arith.addf %26, %28 : vector<16x32xf32>
    %c0_16 = arith.constant 0 : index
    %c0_17 = arith.constant 0 : index
    %30 = vector.load %arg7[%c0_16, %c0_17] : memref<16x32xf32, #tpu.memory_space<vmem>>, vector<16x32xf32>
    tpu.vector_store %arg7[%c0_16, %c0_17], %29 {strides = array<i32>} : memref<16x32xf32, #tpu.memory_space<vmem>>, vector<16x32xf32>,
    return
  }
  func.func @transform_0(%arg0: i32) -> (i32, i32) {
    %c0_i32 = arith.constant 0 : i32
    %c0_i32_0 = arith.constant 0 : i32
    return %arg0, %c0_i32 : i32, i32
  }
  func.func @transform_1(%arg0: i32) -> (i32, i32) {
    %c0_i32 = arith.constant 0 : i32
    %c0_i32_0 = arith.constant 0 : i32
    %c0_i32_1 = arith.constant 0 : i32
    return %c0_i32, %c0_i32_0 : i32, i32
  }
  func.func @transform_2(%arg0: i32) -> (i32, i32) {
    %c0_i32 = arith.constant 0 : i32
    %c0_i32_0 = arith.constant 0 : i32
    %c0_i32_1 = arith.constant 0 : i32
    return %c0_i32, %c0_i32_0 : i32, i32
  }
  func.func @transform_3(%arg0: i32) -> (i32, i32) {
    %c0_i32 = arith.constant 0 : i32
    %c0_i32_0 = arith.constant 0 : i32
    return %arg0, %c0_i32 : i32, i32
  }
  func.func @transform_4(%arg0: i32) -> (i32, i32) {
    %c0_i32 = arith.constant 0 : i32
    %c0_i32_0 = arith.constant 0 : i32
    %c0_i32_1 = arith.constant 0 : i32
    return %c0_i32, %c0_i32_0 : i32, i32
  }
  func.func @transform_5(%arg0: i32) -> (i32, i32) {
    %c0_i32 = arith.constant 0 : i32
    %c0_i32_0 = arith.constant 0 : i32
    %c0_i32_1 = arith.constant 0 : i32
    return %c0_i32, %c0_i32_0 : i32, i32
  }
  func.func @transform_6(%arg0: i32) -> (i32, i32) {
    %c0_i32 = arith.constant 0 : i32
    %c0_i32_0 = arith.constant 0 : i32
    return %arg0, %c0_i32 : i32, i32
  }
}

</mosaic_0001>

<llo_original>
// kernel: decoder_layer_forward.4
$region0: #{decoder_layer_forward.4}
  #allocation0 [shape = 'u32[]', space=smem, size = 0x4, offset = 0x4, fixed_abs, tag = 'smem constant byte address 0x4 - core index']
  #allocation1 [shape = 'u32[144,128]{1,0:T(1,128)}', space=vmem, size = 0x12000, scoped, tag = 'internal scratch']
  %s0 = inlined_call_operand.vmem [shape: f32[16,32], index: 0, kind: input, shape index: {}]
  %s1 = inlined_call_operand.vmem [shape: f32[32,32], index: 1, kind: input, shape index: {}]
  %s2 = inlined_call_operand.vmem [shape: f32[1,32], index: 2, kind: input, shape index: {}]
  %s3 = inlined_call_operand.vmem [shape: f32[32,32], index: 3, kind: input, shape index: {}]
  %s4 = inlined_call_operand.vmem [shape: f32[1,32], index: 4, kind: input, shape index: {}]
  %s5 = inlined_call_operand.vmem [shape: f32[16,32], index: 5, kind: output, shape index: {0}]
  %s6 = inlined_call_operand.vmem [shape: f32[16,32], index: 6, kind: output, shape index: {1}]
  %7 = xla_tuple %s5, %s6
  %s8 = sld [smem:[#allocation0]]
  $region38: #{decoder_layer_forward.4} parent=0
    _
  %s10 = ssub.s32 1, %s8
  %s11 = scalar_select 0, %s10, %s8
  // Predicated region
  $region2: #{decoder_layer_forward.4} parent=0 // pred_check
    _
  $region3: #{decoder_layer_forward.4} parent=0 // pred_check_branch
    %13 = sbr.rel (0) target = $region5
  $region4: #{decoder_layer_forward.4} parent=0 // pred_region
    _
  $region5: #{decoder_layer_forward.4} parent=0 // pred_fallthru
    _
  // Predicated region
  $region6: #{decoder_layer_forward.4} parent=0 // pred_check
    _
  $region7: #{decoder_layer_forward.4} parent=0 // pred_check_branch
    %15 = sbr.rel (0) target = $region9
  $region8: #{decoder_layer_forward.4} parent=0 // pred_region
    _
  $region9: #{decoder_layer_forward.4} parent=0 // pred_fallthru
    _
  // Predicated region
  $region10: #{decoder_layer_forward.4} parent=0 // pred_check
    _
  $region11: #{decoder_layer_forward.4} parent=0 // pred_check_branch
    %17 = sbr.rel (0) target = $region13
  $region12: #{decoder_layer_forward.4} parent=0 // pred_region
    _
  $region13: #{decoder_layer_forward.4} parent=0 // pred_fallthru
    _
  // Predicated region
  $region14: #{decoder_layer_forward.4} parent=0 // pred_check
    _
  $region15: #{decoder_layer_forward.4} parent=0 // pred_check_branch
    %19 = sbr.rel (0) target = $region17
  $region16: #{decoder_layer_forward.4} parent=0 // pred_region
    _
  $region17: #{decoder_layer_forward.4} parent=0 // pred_fallthru
    _
  // Predicated region
  $region18: #{decoder_layer_forward.4} parent=0 // pred_check
    _
  $region19: #{decoder_layer_forward.4} parent=0 // pred_check_branch
    %21 = sbr.rel (0) target = $region21
  $region20: #{decoder_layer_forward.4} parent=0 // pred_region
    _
  $region21: #{decoder_layer_forward.4} parent=0 // pred_fallthru
    _
  %v22 = vld [vmem:[%s0] sm:$0xff]
  %v23 = vld [vmem:[%s0 + $0x8] sm:$0xff]
  %v24 = vld [vmem:[%s1] sm:$0xff]
  %v25 = vld [vmem:[%s1 + $0x8] sm:$0xff]
  %v26 = vld [vmem:[%s1 + $0x10] sm:$0xff]
  %v27 = vld [vmem:[%s1 + $0x18] sm:$0xff]
  %v28 = vld [vmem:[%s2] sm:$0x1]
  %v30 = vlaneseq
  %v31 = vshrl.u32 %v30, 7
  %v32 = vsub.s32 0, %v31
  %v33 = vrot.slane %v28, %v32
  %vm35 = vcmask 261120
  %v37 = vsel %vm35, %v22, 0
  %v40 = vsel %vm35, %v23, 0
  %42 = vmatprep.subr.mxu0 0.0
  %43 = vmatpush1.msra.mxu0 %v24
  %44 = vmatprep.subr.mxu0 0.0
  %45 = vmatpush1.msra.mxu0 %v25
  %46 = vmatprep.subr.mxu0 0.0
  %47 = vmatpush1.msra.mxu0 %v26
  %48 = vmatprep.subr.mxu0 0.0
  %49 = vmatpush1.msra.mxu0 %v27
  %50 = vmatprep.subr.mxu0 0.0
  %51 = vmatpush1.msra.mxu0 0.0
  %52 = vmatprep.subr.mxu0 0.0
  %53 = vmatpush1.msra.mxu0 0.0
  %54 = vmatprep.subr.mxu0 0.0
  %55 = vmatpush1.msra.mxu0 0.0
  %56 = vmatprep.subr.mxu0 0.0
  %57 = vmatpush1.msra.mxu0 0.0
  %58 = vmatprep.subr.mxu0 0.0
  %59 = vmatpush1.msra.mxu0 0.0
  %60 = vmatprep.subr.mxu0 0.0
  %61 = vmatpush1.msra.mxu0 0.0
  %62 = vmatprep.subr.mxu0 0.0
  %63 = vmatpush1.msra.mxu0 0.0
  %64 = vmatprep.subr.mxu0 0.0
  %65 = vmatpush1.msra.mxu0 0.0
  %66 = vmatprep.subr.mxu0 0.0
  %67 = vmatpush1.msra.mxu0 0.0
  %68 = vmatprep.subr.mxu0 0.0
  %69 = vmatpush1.msra.mxu0 0.0
  %70 = vmatprep.subr.mxu0 0.0
  %71 = vmatpush1.msra.mxu0 0.0
  %72 = vmatprep.subr.mxu0 0.0
  %73 = vmatpush1.msra.mxu0 0.0
  %74 = vmatprep.subr.mxu0 0.0
  %75 = vmatpush1.msra.mxu0 0.0
  %76 = vmatprep.subr.mxu0 0.0
  %77 = vmatpush1.msra.mxu0 0.0
  %78 = vmatprep.subr.mxu0 0.0
  %79 = vmatpush1.msra.mxu0 0.0
  %80 = vmatprep.subr.mxu0 0.0
  %81 = vmatpush1.msra.mxu0 0.0
  %82 = vmatprep.subr.mxu0 0.0
  %83 = vmatpush1.msra.mxu0 0.0
  %84 = vmatprep.subr.mxu0 0.0
  %85 = vmatpush1.msra.mxu0 0.0
  %86 = vmatprep.subr.mxu0 0.0
  %87 = vmatpush1.msra.mxu0 0.0
  %88 = vmatprep.subr.mxu0 0.0
  %89 = vmatpush1.msra.mxu0 0.0
  %90 = vmatprep.subr.mxu0 0.0
  %91 = vmatpush1.msra.mxu0 0.0
  %92 = vmatprep.subr.mxu0 0.0
  %93 = vmatpush1.msra.mxu0 0.0
  %94 = vmatprep.subr.mxu0 0.0
  %95 = vmatpush1.msra.mxu0 0.0
  %96 = vmatprep.subr.mxu0 0.0
  %97 = vmatpush1.msra.mxu0 0.0
  %98 = vmatprep.subr.mxu0 0.0
  %99 = vmatpush1.msra.mxu0 0.0
  %100 = vmatprep.subr.mxu0 0.0
  %101 = vmatpush1.msra.mxu0 0.0
  %102 = vmatprep.subr.mxu0 0.0
  %103 = vmatpush1.msra.mxu0 0.0
  %104 = vmatprep.subr.mxu0 0.0
  %105 = vmatpush1.msra.mxu0 0.0
  %106 = vmatprep.mubr.f32.mxu0 0.0
  %107 = vmatmul.mubr.f32.gmra.mrb[0].mxu0 %v37
  %v108 = vpop.f32.mrb[0].mxu0
  %v109 = vadd.f32 %v33, %v108
  %v110 = vpop.f32.mrb[0].mxu0
  %111 = vmatprep.mubr.f32.mxu0 0.0
  %112 = vmatmul.mubr.f32.gmra.mrb[0].mxu0 %v40
  %v113 = vpop.f32.mrb[0].mxu0
  %v114 = vadd.f32 %v33, %v113
  %v115 = vpop.f32.mrb[0].mxu0
  %116 = vdwg.mxu0
  %117 = vst.msk [vmem:[%s5] sm:$0xff] %vm35, %v109
  %118 = vst.msk [vmem:[%s5 + $0x8] sm:$0xff] %vm35, %v114
  %v119 = vld [vmem:[%s3] sm:$0xff]
  %v120 = vld [vmem:[%s3 + $0x8] sm:$0xff]
  %v121 = vld [vmem:[%s3 + $0x10] sm:$0xff]
  %v122 = vld [vmem:[%s3 + $0x18] sm:$0xff]
  %v123 = vld [vmem:[%s4] sm:$0x1]
  %v125 = vlaneseq
  %v126 = vshrl.u32 %v125, 7
  %v127 = vsub.s32 0, %v126
  %v128 = vrot.slane %v123, %v127
  %130 = vmatprep.subr.mxu0 0.0
  %131 = vmatpush1.msra.mxu0 %v119
  %132 = vmatprep.subr.mxu0 0.0
  %133 = vmatpush1.msra.mxu0 %v120
  %134 = vmatprep.subr.mxu0 0.0
  %135 = vmatpush1.msra.mxu0 %v121
  %136 = vmatprep.subr.mxu0 0.0
  %137 = vmatpush1.msra.mxu0 %v122
  %138 = vmatprep.subr.mxu0 0.0
  %139 = vmatpush1.msra.mxu0 0.0
  %140 = vmatprep.subr.mxu0 0.0
  %141 = vmatpush1.msra.mxu0 0.0
  %142 = vmatprep.subr.mxu0 0.0
  %143 = vmatpush1.msra.mxu0 0.0
  %144 = vmatprep.subr.mxu0 0.0
  %145 = vmatpush1.msra.mxu0 0.0
  %146 = vmatprep.subr.mxu0 0.0
  %147 = vmatpush1.msra.mxu0 0.0
  %148 = vmatprep.subr.mxu0 0.0
  %149 = vmatpush1.msra.mxu0 0.0
  %150 = vmatprep.subr.mxu0 0.0
  %151 = vmatpush1.msra.mxu0 0.0
  %152 = vmatprep.subr.mxu0 0.0
  %153 = vmatpush1.msra.mxu0 0.0
  %154 = vmatprep.subr.mxu0 0.0
  %155 = vmatpush1.msra.mxu0 0.0
  %156 = vmatprep.subr.mxu0 0.0
  %157 = vmatpush1.msra.mxu0 0.0
  %158 = vmatprep.subr.mxu0 0.0
  %159 = vmatpush1.msra.mxu0 0.0
  %160 = vmatprep.subr.mxu0 0.0
  %161 = vmatpush1.msra.mxu0 0.0
  %162 = vmatprep.subr.mxu0 0.0
  %163 = vmatpush1.msra.mxu0 0.0
  %164 = vmatprep.subr.mxu0 0.0
  %165 = vmatpush1.msra.mxu0 0.0
  %166 = vmatprep.subr.mxu0 0.0
  %167 = vmatpush1.msra.mxu0 0.0
  %168 = vmatprep.subr.mxu0 0.0
  %169 = vmatpush1.msra.mxu0 0.0
  %170 = vmatprep.subr.mxu0 0.0
  %171 = vmatpush1.msra.mxu0 0.0
  %172 = vmatprep.subr.mxu0 0.0
  %173 = vmatpush1.msra.mxu0 0.0
  %174 = vmatprep.subr.mxu0 0.0
  %175 = vmatpush1.msra.mxu0 0.0
  %176 = vmatprep.subr.mxu0 0.0
  %177 = vmatpush1.msra.mxu0 0.0
  %178 = vmatprep.subr.mxu0 0.0
  %179 = vmatpush1.msra.mxu0 0.0
  %180 = vmatprep.subr.mxu0 0.0
  %181 = vmatpush1.msra.mxu0 0.0
  %182 = vmatprep.subr.mxu0 0.0
  %183 = vmatpush1.msra.mxu0 0.0
  %184 = vmatprep.subr.mxu0 0.0
  %185 = vmatpush1.msra.mxu0 0.0
  %186 = vmatprep.subr.mxu0 0.0
  %187 = vmatpush1.msra.mxu0 0.0
  %188 = vmatprep.subr.mxu0 0.0
  %189 = vmatpush1.msra.mxu0 0.0
  %190 = vmatprep.subr.mxu0 0.0
  %191 = vmatpush1.msra.mxu0 0.0
  %192 = vmatprep.subr.mxu0 0.0
  %193 = vmatpush1.msra.mxu0 0.0
  %194 = vmatprep.mubr.f32.mxu0 0.0
  %195 = vmatmul.mubr.f32.gmra.mrb[0].mxu0 %v37
  %v196 = vpop.f32.mrb[0].mxu0
  %v197 = vadd.f32 %v128, %v196
  %v198 = vpop.f32.mrb[0].mxu0
  %199 = vmatprep.mubr.f32.mxu0 0.0
  %200 = vmatmul.mubr.f32.gmra.mrb[0].mxu0 %v40
  %v201 = vpop.f32.mrb[0].mxu0
  %v202 = vadd.f32 %v128, %v201
  %v203 = vpop.f32.mrb[0].mxu0
  %204 = vdwg.mxu0
  %205 = vst.msk [vmem:[%s6] sm:$0xff] %vm35, %v197
  %206 = vst.msk [vmem:[%s6 + $0x8] sm:$0xff] %vm35, %v202
  // Predicated region
  $region22: #{decoder_layer_forward.4} parent=0 // pred_check
    _
  $region23: #{decoder_layer_forward.4} parent=0 // pred_check_branch
    %208 = sbr.rel (0) target = $region25
  $region24: #{decoder_layer_forward.4} parent=0 // pred_region
    _
  $region25: #{decoder_layer_forward.4} parent=0 // pred_fallthru
    _
  // Predicated region
  $region26: #{decoder_layer_forward.4} parent=0 // pred_check
    _
  $region27: #{decoder_layer_forward.4} parent=0 // pred_check_branch
    %210 = sbr.rel (0) target = $region29
  $region28: #{decoder_layer_forward.4} parent=0 // pred_region
    _
  $region29: #{decoder_layer_forward.4} parent=0 // pred_fallthru
    _
  // Predicated region
  $region30: #{decoder_layer_forward.4} parent=0 // pred_check
    _
  $region31: #{decoder_layer_forward.4} parent=0 // pred_check_branch
    %212 = sbr.rel (0) target = $region33
  $region32: #{decoder_layer_forward.4} parent=0 // pred_region
    _
  $region33: #{decoder_layer_forward.4} parent=0 // pred_fallthru
    _
  // Predicated region
  $region34: #{decoder_layer_forward.4} parent=0 // pred_check
    _
  $region35: #{decoder_layer_forward.4} parent=0 // pred_check_branch
    %214 = sbr.rel (0) target = $region37
  $region36: #{decoder_layer_forward.4} parent=0 // pred_region
    _
  $region37: #{decoder_layer_forward.4} parent=0 // pred_fallthru
    _

// kernel: decoder_layer_forward.5
$region0: #{decoder_layer_forward.5}
  #allocation0 [shape = 'u32[]', space=smem, size = 0x4, offset = 0x4, fixed_abs, tag = 'smem constant byte address 0x4 - core index']
  #allocation1 [shape = 'u32[144,128]{1,0:T(1,128)}', space=vmem, size = 0x12000, scoped, tag = 'internal scratch']
  %s0 = inlined_call_operand.vmem [shape: f32[2,4,8,8], index: 0, kind: input, shape index: {}]
  %s1 = inlined_call_operand.vmem [shape: f32[2,4,8,8], index: 1, kind: input, shape index: {}]
  %s2 = inlined_call_operand.vmem [shape: f32[2,4,8,8], index: 2, kind: output, shape index: {}]
  %s3 = sld [smem:[#allocation0]]
  $region41: #{decoder_layer_forward.5} parent=0
    _
  %s5 = ssub.s32 1, %s3
  %s6 = scalar_select 0, %s5, %s3
  loop: start=0, step=1, limit=4
  $region2: #{decoder_layer_forward.5} parent=0 // loop_pre_header
    _
  $region3: #{decoder_layer_forward.5} parent=0 // loop_header
    %s8 = sphi 0, %s12
    %p9 = scmp.ge.s32.totalorder %s8, 4
    %s15 = sphi 0, %s27
    %s16 = sphi 0, %s23
    %s17 = sphi 0, %s15
    %s18 = sphi 0, %s16
    %s19 = sphi 0, %s17
    %s20 = sphi 0, %s18
    %s32 = sphi 0, %s34
    %s35 = sphi 0, %s32
    %s36 = sphi 0, %s35
    %s52 = sphi 0, %s36
    %s60 = sphi 0, %s62
    %s63 = sphi 0, %s60
    %s64 = sphi 0, %s63
    %s80 = sphi 0, %s64
    %s88 = sphi 0, %s90
    %s91 = sphi 0, %s88
    %s92 = sphi 0, %s91
    %s108 = sphi 0, %s92
  $region4: #{decoder_layer_forward.5} parent=0 // loop_header_branch
    %11 = sbr.rel (%p9) target = $region8
  $region5: #{decoder_layer_forward.5} parent=0 // loop_body
    %s13 = ssub.s32 %s8, 1
    %s14 = ssub.s32 %s8, 2
    %s21 = sadd.s32 1, %s16
    %p22 = scmp.ge.s32.totalorder %s21, 1
    %s23 = scalar_select %p22, 0, %s21
    %s24 = sadd.s32 1, %s15
    %s25 = scalar_select %p22, %s24, %s15
    %p26 = scmp.ge.s32.totalorder %s25, 2
    %s27 = scalar_select %p26, 0, %s25
    %s28 = ssub.s32 %s15, %s27
    %s29 = ssub.s32 %s16, %s23
    %s30 = sor.u32 %s28, %s29
    %p31 = scmp.eq.s32.totalorder %s30, 0
    %s33 = sadd.s32 %s32, 1
    %s34 = scalar_select %p31, %s32, %s33
    %p37 = pneg %p31
    %p38 = scmp.eq.s32.totalorder %s8, 1
    %p39 = por %p37, %p38
    %p40 = scmp.ne.s32.totalorder %s32, %s35
    %p41 = scmp.eq.s32.totalorder %s8, 0
    %p42 = por %p40, %p41
    %p43 = scmp.ne.s32.totalorder %s32, %s35
    %p44 = scmp.eq.s32.totalorder %s13, 1
    %p45 = por %p43, %p44
    %p46 = scmp.ne.s32.totalorder %s35, %s36
    %p47 = scmp.eq.s32.totalorder %s13, 0
    %p48 = por %p46, %p47
    %p49 = scmp.ne.s32.totalorder %s35, %s36
    %p50 = scmp.eq.s32.totalorder %s14, 1
    %p51 = por %p49, %p50
    %p53 = scmp.ne.s32.totalorder %s36, %s52
    %p54 = scmp.eq.s32.totalorder %s14, 0
    %p55 = por %p53, %p54
    %s56 = ssub.s32 %s15, %s27
    %s57 = ssub.s32 %s16, %s23
    %s58 = sor.u32 %s56, %s57
    %p59 = scmp.eq.s32.totalorder %s58, 0
    %s61 = sadd.s32 %s60, 1
    %s62 = scalar_select %p59, %s60, %s61
    %p65 = pneg %p59
    %p66 = scmp.eq.s32.totalorder %s8, 1
    %p67 = por %p65, %p66
    %p68 = scmp.ne.s32.totalorder %s60, %s63
    %p69 = scmp.eq.s32.totalorder %s8, 0
    %p70 = por %p68, %p69
    %p71 = scmp.ne.s32.totalorder %s60, %s63
    %p72 = scmp.eq.s32.totalorder %s13, 1
    %p73 = por %p71, %p72
    %p74 = scmp.ne.s32.totalorder %s63, %s64
    %p75 = scmp.eq.s32.totalorder %s13, 0
    %p76 = por %p74, %p75
    %p77 = scmp.ne.s32.totalorder %s63, %s64
    %p78 = scmp.eq.s32.totalorder %s14, 1
    %p79 = por %p77, %p78
    %p81 = scmp.ne.s32.totalorder %s64, %s80
    %p82 = scmp.eq.s32.totalorder %s14, 0
    %p83 = por %p81, %p82
    %s84 = ssub.s32 %s15, %s27
    %s85 = ssub.s32 %s16, %s23
    %s86 = sor.u32 %s84, %s85
    %p87 = scmp.eq.s32.totalorder %s86, 0
    %s89 = sadd.s32 %s88, 1
    %s90 = scalar_select %p87, %s88, %s89
    %p93 = pneg %p87
    %p94 = scmp.eq.s32.totalorder %s8, 1
    %p95 = por %p93, %p94
    %p96 = scmp.ne.s32.totalorder %s88, %s91
    %p97 = scmp.eq.s32.totalorder %s8, 0
    %p98 = por %p96, %p97
    %p99 = scmp.ne.s32.totalorder %s88, %s91
    %p100 = scmp.eq.s32.totalorder %s13, 1
    %p101 = por %p99, %p100
    %p102 = scmp.ne.s32.totalorder %s91, %s92
    %p103 = scmp.eq.s32.totalorder %s13, 0
    %p104 = por %p102, %p103
    %p105 = scmp.ne.s32.totalorder %s91, %s92
    %p106 = scmp.eq.s32.totalorder %s14, 1
    %p107 = por %p105, %p106
    %p109 = scmp.ne.s32.totalorder %s92, %s108
    %p110 = scmp.eq.s32.totalorder %s14, 0
    %p111 = por %p109, %p110
    %p112 = scmp.le.s32.totalorder 1, %s8
    %p113 = scmp.lt.s32.totalorder %s8, 3
    %p114 = pnand %p112, %p113
    %p115 = pneg %p114
    // Predicated region
    $region9: #{decoder_layer_forward.5} parent=5 // pred_check
      _
    $region10: #{decoder_layer_forward.5} parent=5 // pred_check_branch
      %117 = sbr.rel (%p114) target = $region12
    $region11: #{decoder_layer_forward.5} parent=5 // pred_region
      %s118 = ssub.s32 %s8, 1
    $region12: #{decoder_layer_forward.5} parent=5 // pred_fallthru
      _
    %p119 = scmp.lt.s32.totalorder %s8, 2
    // Predicated region
    $region13: #{decoder_layer_forward.5} parent=5 // pred_check
      %p120 = pneg %p119
    $region14: #{decoder_layer_forward.5} parent=5 // pred_check_branch
      %122 = sbr.rel (%p120) target = $region16
    $region15: #{decoder_layer_forward.5} parent=5 // pred_region
      // Predicated region
      $region17: #{decoder_layer_forward.5} parent=15 // pred_check
        %p123 = pneg %p42
      $region18: #{decoder_layer_forward.5} parent=15 // pred_check_branch
        %125 = sbr.rel (%p123) target = $region20
      $region19: #{decoder_layer_forward.5} parent=15 // pred_region
        %s126 = smul.u32 4, %s16
        %p127 = scmp.lt.s32.totalorder %s15, 1
        %s128 = scalar_select %p127, %s15, 1
        %p129 = scmp.lt.s32.totalorder %s126, 3
        %s130 = scalar_select %p129, %s126, 3
        %s131 = smul.addr %s128, 4
        %s132 = sadd.s32 %s130, %s131
        %s133 = smul.addr %s132, 8
        %s134 = scalar_lea.vmem %s0, %s133
        %s135 = smul.u32 4, %s16
      $region20: #{decoder_layer_forward.5} parent=15 // pred_fallthru
        _
      // Predicated region
      $region21: #{decoder_layer_forward.5} parent=15 // pred_check
        %p136 = pneg %p70
      $region22: #{decoder_layer_forward.5} parent=15 // pred_check_branch
        %138 = sbr.rel (%p136) target = $region24
      $region23: #{decoder_layer_forward.5} parent=15 // pred_region
        %s139 = smul.u32 4, %s16
        %p140 = scmp.lt.s32.totalorder %s15, 1
        %s141 = scalar_select %p140, %s15, 1
        %p142 = scmp.lt.s32.totalorder %s139, 3
        %s143 = scalar_select %p142, %s139, 3
        %s144 = smul.addr %s141, 4
        %s145 = sadd.s32 %s143, %s144
        %s146 = smul.addr %s145, 8
        %s147 = scalar_lea.vmem %s1, %s146
        %s148 = smul.u32 4, %s16
      $region24: #{decoder_layer_forward.5} parent=15 // pred_fallthru
        _
    $region16: #{decoder_layer_forward.5} parent=5 // pred_fallthru
      _
    %p149 = scmp.le.s32.totalorder 1, %s8
    %p150 = scmp.lt.s32.totalorder %s8, 3
    %p151 = pnand %p149, %p150
    %p152 = pneg %p151
    // Predicated region
    $region25: #{decoder_layer_forward.5} parent=5 // pred_check
      _
    $region26: #{decoder_layer_forward.5} parent=5 // pred_check_branch
      %154 = sbr.rel (%p151) target = $region28
    $region27: #{decoder_layer_forward.5} parent=5 // pred_region
      %s155 = ssub.s32 %s8, 1
      %s156 = smul.u32 4, %s18
      %p157 = scmp.lt.s32.totalorder %s17, 1
      %s158 = scalar_select %p157, %s17, 1
      %p159 = scmp.lt.s32.totalorder %s156, 3
      %s160 = scalar_select %p159, %s156, 3
      %s161 = smul.addr %s158, 4
      %s162 = sadd.s32 %s160, %s161
      %s163 = smul.addr %s162, 8
      %s164 = scalar_lea.vmem %s0, %s163
      %p165 = pneg %p48
      %p166 = pneg %p45
      %s167 = smul.u32 4, %s18
      %p168 = scmp.lt.s32.totalorder %s17, 1
      %s169 = scalar_select %p168, %s17, 1
      %p170 = scmp.lt.s32.totalorder %s167, 3
      %s171 = scalar_select %p170, %s167, 3
      %s172 = smul.addr %s169, 4
      %s173 = sadd.s32 %s171, %s172
      %s174 = smul.addr %s173, 8
      %s175 = scalar_lea.vmem %s1, %s174
      %p176 = pneg %p76
      %p177 = pneg %p73
      %p178 = pneg %p104
      %p179 = pneg %p101
      %s180 = smul.u32 4, %s18
      %p181 = scmp.lt.s32.totalorder %s17, 1
      %s182 = scalar_select %p181, %s17, 1
      %p183 = scmp.lt.s32.totalorder %s180, 3
      %s184 = scalar_select %p183, %s180, 3
      %s185 = smul.addr %s182, 4
      %s186 = sadd.s32 %s184, %s185
      %s187 = smul.addr %s186, 8
      %s188 = scalar_lea.vmem %s2, %s187
      %s189 = smul.u32 4, %s18
      %p190 = scmp.lt.s32.totalorder %s17, 1
      %s191 = scalar_select %p190, %s17, 1
      %p192 = scmp.lt.s32.totalorder %s189, 3
      %s193 = scalar_select %p192, %s189, 3
      %s194 = smul.addr %s191, 4
      %s195 = sadd.s32 %s193, %s194
      %s196 = smul.addr %s195, 8
      %s197 = scalar_lea.vmem %s0, %s196
      %s198 = smul.u32 4, %s18
      %s199 = smul.u32 4, %s18
      %p200 = scmp.lt.s32.totalorder %s17, 1
      %s201 = scalar_select %p200, %s17, 1
      %p202 = scmp.lt.s32.totalorder %s199, 3
      %s203 = scalar_select %p202, %s199, 3
      %s204 = smul.addr %s201, 4
      %s205 = sadd.s32 %s203, %s204
      %s206 = smul.addr %s205, 8
      %s207 = scalar_lea.vmem %s1, %s206
      %s208 = smul.u32 4, %s18
      %s209 = smul.u32 4, %s18
      %p210 = scmp.lt.s32.totalorder %s17, 1
      %s211 = scalar_select %p210, %s17, 1
      %p212 = scmp.lt.s32.totalorder %s209, 3
      %s213 = scalar_select %p212, %s209, 3
      %s214 = smul.addr %s211, 4
      %s215 = sadd.s32 %s213, %s214
      %s216 = smul.addr %s215, 8
      %s217 = scalar_lea.vmem %s2, %s216
      %s218 = smul.u32 4, %s18
      %v219 = vld [vmem:[%s197] sm:$0xff]
      %v220 = vld [vmem:[%s197 + $0x8] sm:$0xff]
      %v221 = vld [vmem:[%s197 + $0x10] sm:$0xff]
      %v222 = vld [vmem:[%s197 + $0x18] sm:$0xff]
      %v223 = vld [vmem:[%s207] sm:$0xff]
      %v224 = vld [vmem:[%s207 + $0x8] sm:$0xff]
      %v225 = vld [vmem:[%s207 + $0x10] sm:$0xff]
      %v226 = vld [vmem:[%s207 + $0x18] sm:$0xff]
      %vm227 = vcmask 64512
      %v229 = vsel %vm227, %v219, 0
      %v232 = vsel %vm227, %v223, 0
      %234 = vmatprep.subr.mxu0 0.0
      %235 = vmatpush1.xpose.msra.mxu0 %v232
      %236 = vmatprep.subr.mxu0 0.0
      %237 = vmatpush1.xpose.msra.mxu0 0.0
      %238 = vmatprep.subr.mxu0 0.0
      %239 = vmatpush1.xpose.msra.mxu0 0.0
      %240 = vmatprep.subr.mxu0 0.0
      %241 = vmatpush1.xpose.msra.mxu0 0.0
      %242 = vmatprep.subr.mxu0 0.0
      %243 = vmatpush1.xpose.msra.mxu0 0.0
      %244 = vmatprep.subr.mxu0 0.0
      %245 = vmatpush1.xpose.msra.mxu0 0.0
      %246 = vmatprep.subr.mxu0 0.0
      %247 = vmatpush1.xpose.msra.mxu0 0.0
      %248 = vmatprep.subr.mxu0 0.0
      %249 = vmatpush1.xpose.msra.mxu0 0.0
      %250 = vmatprep.subr.mxu0 0.0
      %251 = vmatpush1.xpose.msra.mxu0 0.0
      %252 = vmatprep.subr.mxu0 0.0
      %253 = vmatpush1.xpose.msra.mxu0 0.0
      %254 = vmatprep.subr.mxu0 0.0
      %255 = vmatpush1.xpose.msra.mxu0 0.0
      %256 = vmatprep.subr.mxu0 0.0
      %257 = vmatpush1.xpose.msra.mxu0 0.0
      %258 = vmatprep.subr.mxu0 0.0
      %259 = vmatpush1.xpose.msra.mxu0 0.0
      %260 = vmatprep.subr.mxu0 0.0
      %261 = vmatpush1.xpose.msra.mxu0 0.0
      %262 = vmatprep.subr.mxu0 0.0
      %263 = vmatpush1.xpose.msra.mxu0 0.0
      %264 = vmatprep.subr.mxu0 0.0
      %265 = vmatpush1.xpose.msra.mxu0 0.0
      %266 = vmatprep.subr.mxu0 0.0
      %267 = vmatpush1.xpose.msra.mxu0 0.0
      %268 = vmatprep.subr.mxu0 0.0
      %269 = vmatpush1.xpose.msra.mxu0 0.0
      %270 = vmatprep.subr.mxu0 0.0
      %271 = vmatpush1.xpose.msra.mxu0 0.0
      %272 = vmatprep.subr.mxu0 0.0
      %273 = vmatpush1.xpose.msra.mxu0 0.0
      %274 = vmatprep.subr.mxu0 0.0
      %275 = vmatpush1.xpose.msra.mxu0 0.0
      %276 = vmatprep.subr.mxu0 0.0
      %277 = vmatpush1.xpose.msra.mxu0 0.0
      %278 = vmatprep.subr.mxu0 0.0
      %279 = vmatpush1.xpose.msra.mxu0 0.0
      %280 = vmatprep.subr.mxu0 0.0
      %281 = vmatpush1.xpose.msra.mxu0 0.0
      %282 = vmatprep.subr.mxu0 0.0
      %283 = vmatpush1.xpose.msra.mxu0 0.0
      %284 = vmatprep.subr.mxu0 0.0
      %285 = vmatpush1.xpose.msra.mxu0 0.0
      %286 = vmatprep.subr.mxu0 0.0
      %287 = vmatpush1.xpose.msra.mxu0 0.0
      %288 = vmatprep.subr.mxu0 0.0
      %289 = vmatpush1.xpose.msra.mxu0 0.0
      %290 = vmatprep.subr.mxu0 0.0
      %291 = vmatpush1.xpose.msra.mxu0 0.0
      %292 = vmatprep.subr.mxu0 0.0
      %293 = vmatpush1.xpose.msra.mxu0 0.0
      %294 = vmatprep.subr.mxu0 0.0
      %295 = vmatpush1.xpose.msra.mxu0 0.0
      %296 = vmatprep.subr.mxu0 0.0
      %297 = vmatpush1.xpose.msra.mxu0 0.0
      %298 = vmatprep.mubr.f32.mxu0 0.0
      %299 = vmatmul.mubr.f32.gmra.mrb[0].mxu0 %v229
      %v300 = vpop.f32.mrb[0].mxu0
      %v301 = vadd.f32 0.0, %v300
      %v302 = vpop.f32.mrb[0].mxu0
      %303 = vdwg.mxu0
      %v305 = vsel %vm227, %v220, 0
      %v308 = vsel %vm227, %v224, 0
      %310 = vmatprep.subr.mxu0 0.0
      %311 = vmatpush1.xpose.msra.mxu0 %v308
      %312 = vmatprep.subr.mxu0 0.0
      %313 = vmatpush1.xpose.msra.mxu0 0.0
      %314 = vmatprep.subr.mxu0 0.0
      %315 = vmatpush1.xpose.msra.mxu0 0.0
      %316 = vmatprep.subr.mxu0 0.0
      %317 = vmatpush1.xpose.msra.mxu0 0.0
      %318 = vmatprep.subr.mxu0 0.0
      %319 = vmatpush1.xpose.msra.mxu0 0.0
      %320 = vmatprep.subr.mxu0 0.0
      %321 = vmatpush1.xpose.msra.mxu0 0.0
      %322 = vmatprep.subr.mxu0 0.0
      %323 = vmatpush1.xpose.msra.mxu0 0.0
      %324 = vmatprep.subr.mxu0 0.0
      %325 = vmatpush1.xpose.msra.mxu0 0.0
      %326 = vmatprep.subr.mxu0 0.0
      %327 = vmatpush1.xpose.msra.mxu0 0.0
      %328 = vmatprep.subr.mxu0 0.0
      %329 = vmatpush1.xpose.msra.mxu0 0.0
      %330 = vmatprep.subr.mxu0 0.0
      %331 = vmatpush1.xpose.msra.mxu0 0.0
      %332 = vmatprep.subr.mxu0 0.0
      %333 = vmatpush1.xpose.msra.mxu0 0.0
      %334 = vmatprep.subr.mxu0 0.0
      %335 = vmatpush1.xpose.msra.mxu0 0.0
      %336 = vmatprep.subr.mxu0 0.0
      %337 = vmatpush1.xpose.msra.mxu0 0.0
      %338 = vmatprep.subr.mxu0 0.0
      %339 = vmatpush1.xpose.msra.mxu0 0.0
      %340 = vmatprep.subr.mxu0 0.0
      %341 = vmatpush1.xpose.msra.mxu0 0.0
      %342 = vmatprep.subr.mxu0 0.0
      %343 = vmatpush1.xpose.msra.mxu0 0.0
      %344 = vmatprep.subr.mxu0 0.0
      %345 = vmatpush1.xpose.msra.mxu0 0.0
      %346 = vmatprep.subr.mxu0 0.0
      %347 = vmatpush1.xpose.msra.mxu0 0.0
      %348 = vmatprep.subr.mxu0 0.0
      %349 = vmatpush1.xpose.msra.mxu0 0.0
      %350 = vmatprep.subr.mxu0 0.0
      %351 = vmatpush1.xpose.msra.mxu0 0.0
      %352 = vmatprep.subr.mxu0 0.0
      %353 = vmatpush1.xpose.msra.mxu0 0.0
      %354 = vmatprep.subr.mxu0 0.0
      %355 = vmatpush1.xpose.msra.mxu0 0.0
      %356 = vmatprep.subr.mxu0 0.0
      %357 = vmatpush1.xpose.msra.mxu0 0.0
      %358 = vmatprep.subr.mxu0 0.0
      %359 = vmatpush1.xpose.msra.mxu0 0.0
      %360 = vmatprep.subr.mxu0 0.0
      %361 = vmatpush1.xpose.msra.mxu0 0.0
      %362 = vmatprep.subr.mxu0 0.0
      %363 = vmatpush1.xpose.msra.mxu0 0.0
      %364 = vmatprep.subr.mxu0 0.0
      %365 = vmatpush1.xpose.msra.mxu0 0.0
      %366 = vmatprep.subr.mxu0 0.0
      %367 = vmatpush1.xpose.msra.mxu0 0.0
      %368 = vmatprep.subr.mxu0 0.0
      %369 = vmatpush1.xpose.msra.mxu0 0.0
      %370 = vmatprep.subr.mxu0 0.0
      %371 = vmatpush1.xpose.msra.mxu0 0.0
      %372 = vmatprep.subr.mxu0 0.0
      %373 = vmatpush1.xpose.msra.mxu0 0.0
      %374 = vmatprep.mubr.f32.mxu0 0.0
      %375 = vmatmul.mubr.f32.gmra.mrb[0].mxu0 %v305
      %v376 = vpop.f32.mrb[0].mxu0
      %v377 = vadd.f32 0.0, %v376
      %v378 = vpop.f32.mrb[0].mxu0
      %379 = vdwg.mxu0
      %v381 = vsel %vm227, %v221, 0
      %v384 = vsel %vm227, %v225, 0
      %386 = vmatprep.subr.mxu0 0.0
      %387 = vmatpush1.xpose.msra.mxu0 %v384
      %388 = vmatprep.subr.mxu0 0.0
      %389 = vmatpush1.xpose.msra.mxu0 0.0
      %390 = vmatprep.subr.mxu0 0.0
      %391 = vmatpush1.xpose.msra.mxu0 0.0
      %392 = vmatprep.subr.mxu0 0.0
      %393 = vmatpush1.xpose.msra.mxu0 0.0
      %394 = vmatprep.subr.mxu0 0.0
      %395 = vmatpush1.xpose.msra.mxu0 0.0
      %396 = vmatprep.subr.mxu0 0.0
      %397 = vmatpush1.xpose.msra.mxu0 0.0
      %398 = vmatprep.subr.mxu0 0.0
      %399 = vmatpush1.xpose.msra.mxu0 0.0
      %400 = vmatprep.subr.mxu0 0.0
      %401 = vmatpush1.xpose.msra.mxu0 0.0
      %402 = vmatprep.subr.mxu0 0.0
      %403 = vmatpush1.xpose.msra.mxu0 0.0
      %404 = vmatprep.subr.mxu0 0.0
      %405 = vmatpush1.xpose.msra.mxu0 0.0
      %406 = vmatprep.subr.mxu0 0.0
      %407 = vmatpush1.xpose.msra.mxu0 0.0
      %408 = vmatprep.subr.mxu0 0.0
      %409 = vmatpush1.xpose.msra.mxu0 0.0
      %410 = vmatprep.subr.mxu0 0.0
      %411 = vmatpush1.xpose.msra.mxu0 0.0
      %412 = vmatprep.subr.mxu0 0.0
      %413 = vmatpush1.xpose.msra.mxu0 0.0
      %414 = vmatprep.subr.mxu0 0.0
      %415 = vmatpush1.xpose.msra.mxu0 0.0
      %416 = vmatprep.subr.mxu0 0.0
      %417 = vmatpush1.xpose.msra.mxu0 0.0
      %418 = vmatprep.subr.mxu0 0.0
      %419 = vmatpush1.xpose.msra.mxu0 0.0
      %420 = vmatprep.subr.mxu0 0.0
      %421 = vmatpush1.xpose.msra.mxu0 0.0
      %422 = vmatprep.subr.mxu0 0.0
      %423 = vmatpush1.xpose.msra.mxu0 0.0
      %424 = vmatprep.subr.mxu0 0.0
      %425 = vmatpush1.xpose.msra.mxu0 0.0
      %426 = vmatprep.subr.mxu0 0.0
      %427 = vmatpush1.xpose.msra.mxu0 0.0
      %428 = vmatprep.subr.mxu0 0.0
      %429 = vmatpush1.xpose.msra.mxu0 0.0
      %430 = vmatprep.subr.mxu0 0.0
      %431 = vmatpush1.xpose.msra.mxu0 0.0
      %432 = vmatprep.subr.mxu0 0.0
      %433 = vmatpush1.xpose.msra.mxu0 0.0
      %434 = vmatprep.subr.mxu0 0.0
      %435 = vmatpush1.xpose.msra.mxu0 0.0
      %436 = vmatprep.subr.mxu0 0.0
      %437 = vmatpush1.xpose.msra.mxu0 0.0
      %438 = vmatprep.subr.mxu0 0.0
      %439 = vmatpush1.xpose.msra.mxu0 0.0
      %440 = vmatprep.subr.mxu0 0.0
      %441 = vmatpush1.xpose.msra.mxu0 0.0
      %442 = vmatprep.subr.mxu0 0.0
      %443 = vmatpush1.xpose.msra.mxu0 0.0
      %444 = vmatprep.subr.mxu0 0.0
      %445 = vmatpush1.xpose.msra.mxu0 0.0
      %446 = vmatprep.subr.mxu0 0.0
      %447 = vmatpush1.xpose.msra.mxu0 0.0
      %448 = vmatprep.subr.mxu0 0.0
      %449 = vmatpush1.xpose.msra.mxu0 0.0
      %450 = vmatprep.mubr.f32.mxu0 0.0
      %451 = vmatmul.mubr.f32.gmra.mrb[0].mxu0 %v381
      %v452 = vpop.f32.mrb[0].mxu0
      %v453 = vadd.f32 0.0, %v452
      %v454 = vpop.f32.mrb[0].mxu0
      %455 = vdwg.mxu0
      %v457 = vsel %vm227, %v222, 0
      %v460 = vsel %vm227, %v226, 0
      %462 = vmatprep.subr.mxu0 0.0
      %463 = vmatpush1.xpose.msra.mxu0 %v460
      %464 = vmatprep.subr.mxu0 0.0
      %465 = vmatpush1.xpose.msra.mxu0 0.0
      %466 = vmatprep.subr.mxu0 0.0
      %467 = vmatpush1.xpose.msra.mxu0 0.0
      %468 = vmatprep.subr.mxu0 0.0
      %469 = vmatpush1.xpose.msra.mxu0 0.0
      %470 = vmatprep.subr.mxu0 0.0
      %471 = vmatpush1.xpose.msra.mxu0 0.0
      %472 = vmatprep.subr.mxu0 0.0
      %473 = vmatpush1.xpose.msra.mxu0 0.0
      %474 = vmatprep.subr.mxu0 0.0
      %475 = vmatpush1.xpose.msra.mxu0 0.0
      %476 = vmatprep.subr.mxu0 0.0
      %477 = vmatpush1.xpose.msra.mxu0 0.0
      %478 = vmatprep.subr.mxu0 0.0
      %479 = vmatpush1.xpose.msra.mxu0 0.0
      %480 = vmatprep.subr.mxu0 0.0
      %481 = vmatpush1.xpose.msra.mxu0 0.0
      %482 = vmatprep.subr.mxu0 0.0
      %483 = vmatpush1.xpose.msra.mxu0 0.0
      %484 = vmatprep.subr.mxu0 0.0
      %485 = vmatpush1.xpose.msra.mxu0 0.0
      %486 = vmatprep.subr.mxu0 0.0
      %487 = vmatpush1.xpose.msra.mxu0 0.0
      %488 = vmatprep.subr.mxu0 0.0
      %489 = vmatpush1.xpose.msra.mxu0 0.0
      %490 = vmatprep.subr.mxu0 0.0
      %491 = vmatpush1.xpose.msra.mxu0 0.0
      %492 = vmatprep.subr.mxu0 0.0
      %493 = vmatpush1.xpose.msra.mxu0 0.0
      %494 = vmatprep.subr.mxu0 0.0
      %495 = vmatpush1.xpose.msra.mxu0 0.0
      %496 = vmatprep.subr.mxu0 0.0
      %497 = vmatpush1.xpose.msra.mxu0 0.0
      %498 = vmatprep.subr.mxu0 0.0
      %499 = vmatpush1.xpose.msra.mxu0 0.0
      %500 = vmatprep.subr.mxu0 0.0
      %501 = vmatpush1.xpose.msra.mxu0 0.0
      %502 = vmatprep.subr.mxu0 0.0
      %503 = vmatpush1.xpose.msra.mxu0 0.0
      %504 = vmatprep.subr.mxu0 0.0
      %505 = vmatpush1.xpose.msra.mxu0 0.0
      %506 = vmatprep.subr.mxu0 0.0
      %507 = vmatpush1.xpose.msra.mxu0 0.0
      %508 = vmatprep.subr.mxu0 0.0
      %509 = vmatpush1.xpose.msra.mxu0 0.0
      %510 = vmatprep.subr.mxu0 0.0
      %511 = vmatpush1.xpose.msra.mxu0 0.0
      %512 = vmatprep.subr.mxu0 0.0
      %513 = vmatpush1.xpose.msra.mxu0 0.0
      %514 = vmatprep.subr.mxu0 0.0
      %515 = vmatpush1.xpose.msra.mxu0 0.0
      %516 = vmatprep.subr.mxu0 0.0
      %517 = vmatpush1.xpose.msra.mxu0 0.0
      %518 = vmatprep.subr.mxu0 0.0
      %519 = vmatpush1.xpose.msra.mxu0 0.0
      %520 = vmatprep.subr.mxu0 0.0
      %521 = vmatpush1.xpose.msra.mxu0 0.0
      %522 = vmatprep.subr.mxu0 0.0
      %523 = vmatpush1.xpose.msra.mxu0 0.0
      %524 = vmatprep.subr.mxu0 0.0
      %525 = vmatpush1.xpose.msra.mxu0 0.0
      %526 = vmatprep.mubr.f32.mxu0 0.0
      %527 = vmatmul.mubr.f32.gmra.mrb[0].mxu0 %v457
      %v528 = vpop.f32.mrb[0].mxu0
      %v529 = vadd.f32 0.0, %v528
      %v530 = vpop.f32.mrb[0].mxu0
      %531 = vdwg.mxu0
      %v532 = vmul.f32 %v301, 0.35355338
      %v533 = vmul.f32 %v377, 0.35355338
      %v534 = vmul.f32 %v453, 0.35355338
      %v535 = vmul.f32 %v529, 0.35355338
      %v536 = vlaneseq
      %v537 = vshrl.u32 %v536, 7
      %v538 = vlaneseq
      %v539 = vand.u32 %v538, 127
      %vm540 = vcmp.le.s32.totalorder %v539, %v537
      %v541 = vsel %vm540, 1, 0
      %vm542 = vcmp.eq.s32.totalorder %v541, 1
      %v543 = vsel %vm542, %v532, -1e+09
      %v544 = vsel %vm542, %v533, -1e+09
      %v545 = vsel %vm542, %v534, -1e+09
      %v546 = vsel %vm542, %v535, -1e+09
      %v547 = vsel %vm227, %v543, -inf
      %548 = vmax.xlane.f32.xlu0 %v547
      %v549 = vpop.xlane.xlu0 %548
      %v550 = vsel %vm227, %v544, -inf
      %551 = vmax.xlane.f32.xlu0 %v550
      %v552 = vpop.xlane.xlu0 %551
      %v553 = vsel %vm227, %v545, -inf
      %554 = vmax.xlane.f32.xlu0 %v553
      %v555 = vpop.xlane.xlu0 %554
      %v556 = vsel %vm227, %v546, -inf
      %557 = vmax.xlane.f32.xlu0 %v556
      %v558 = vpop.xlane.xlu0 %557
      %v559 = vsub.f32 %v543, %v549
      %v560 = vsub.f32 %v544, %v552
      %v561 = vsub.f32 %v545, %v555
      %v562 = vsub.f32 %v546, %v558
      %v563 = vmul.f32 %v559, 1.442695
      %v564 = vpow.pop %v563
      %v565 = vmul.f32 %v560, 1.442695
      %v566 = vpow.pop %v565
      %v567 = vmul.f32 %v561, 1.442695
      %v568 = vpow.pop %v567
      %v569 = vmul.f32 %v562, 1.442695
      %v570 = vpow.pop %v569
      %v571 = vsel %vm227, %v564, 0.0
      %572 = vadd.xlane.f32.xlu0 %v571
      %v573 = vpop.xlane.xlu0 %572
      %v574 = vsel %vm227, %v566, 0.0
      %575 = vadd.xlane.f32.xlu0 %v574
      %v576 = vpop.xlane.xlu0 %575
      %v577 = vsel %vm227, %v568, 0.0
      %578 = vadd.xlane.f32.xlu0 %v577
      %v579 = vpop.xlane.xlu0 %578
      %v580 = vsel %vm227, %v570, 0.0
      %581 = vadd.xlane.f32.xlu0 %v580
      %v582 = vpop.xlane.xlu0 %581
      %v583 = vrcp.pop %v573
      %v584 = vmul.f32 %v564, %v583
      %v585 = vrcp.pop %v576
      %v586 = vmul.f32 %v566, %v585
      %v587 = vrcp.pop %v579
      %v588 = vmul.f32 %v568, %v587
      %v589 = vrcp.pop %v582
      %v590 = vmul.f32 %v570, %v589
      %v592 = vsel %vm227, %v584, 0
      %594 = vmatprep.subr.mxu0 0.0
      %595 = vmatpush1.msra.mxu0 %v219
      %596 = vmatprep.subr.mxu0 0.0
      %597 = vmatpush1.msra.mxu0 0.0
      %598 = vmatprep.subr.mxu0 0.0
      %599 = vmatpush1.msra.mxu0 0.0
      %600 = vmatprep.subr.mxu0 0.0
      %601 = vmatpush1.msra.mxu0 0.0
      %602 = vmatprep.subr.mxu0 0.0
      %603 = vmatpush1.msra.mxu0 0.0
      %604 = vmatprep.subr.mxu0 0.0
      %605 = vmatpush1.msra.mxu0 0.0
      %606 = vmatprep.subr.mxu0 0.0
      %607 = vmatpush1.msra.mxu0 0.0
      %608 = vmatprep.subr.mxu0 0.0
      %609 = vmatpush1.msra.mxu0 0.0
      %610 = vmatprep.subr.mxu0 0.0
      %611 = vmatpush1.msra.mxu0 0.0
      %612 = vmatprep.subr.mxu0 0.0
      %613 = vmatpush1.msra.mxu0 0.0
      %614 = vmatprep.subr.mxu0 0.0
      %615 = vmatpush1.msra.mxu0 0.0
      %616 = vmatprep.subr.mxu0 0.0
      %617 = vmatpush1.msra.mxu0 0.0
      %618 = vmatprep.subr.mxu0 0.0
      %619 = vmatpush1.msra.mxu0 0.0
      %620 = vmatprep.subr.mxu0 0.0
      %621 = vmatpush1.msra.mxu0 0.0
      %622 = vmatprep.subr.mxu0 0.0
      %623 = vmatpush1.msra.mxu0 0.0
      %624 = vmatprep.subr.mxu0 0.0
      %625 = vmatpush1.msra.mxu0 0.0
      %626 = vmatprep.subr.mxu0 0.0
      %627 = vmatpush1.msra.mxu0 0.0
      %628 = vmatprep.subr.mxu0 0.0
      %629 = vmatpush1.msra.mxu0 0.0
      %630 = vmatprep.subr.mxu0 0.0
      %631 = vmatpush1.msra.mxu0 0.0
      %632 = vmatprep.subr.mxu0 0.0
      %633 = vmatpush1.msra.mxu0 0.0
      %634 = vmatprep.subr.mxu0 0.0
      %635 = vmatpush1.msra.mxu0 0.0
      %636 = vmatprep.subr.mxu0 0.0
      %637 = vmatpush1.msra.mxu0 0.0
      %638 = vmatprep.subr.mxu0 0.0
      %639 = vmatpush1.msra.mxu0 0.0
      %640 = vmatprep.subr.mxu0 0.0
      %641 = vmatpush1.msra.mxu0 0.0
      %642 = vmatprep.subr.mxu0 0.0
      %643 = vmatpush1.msra.mxu0 0.0
      %644 = vmatprep.subr.mxu0 0.0
      %645 = vmatpush1.msra.mxu0 0.0
      %646 = vmatprep.subr.mxu0 0.0
      %647 = vmatpush1.msra.mxu0 0.0
      %648 = vmatprep.subr.mxu0 0.0
      %649 = vmatpush1.msra.mxu0 0.0
      %650 = vmatprep.subr.mxu0 0.0
      %651 = vmatpush1.msra.mxu0 0.0
      %652 = vmatprep.subr.mxu0 0.0
      %653 = vmatpush1.msra.mxu0 0.0
      %654 = vmatprep.subr.mxu0 0.0
      %655 = vmatpush1.msra.mxu0 0.0
      %656 = vmatprep.subr.mxu0 0.0
      %657 = vmatpush1.msra.mxu0 0.0
      %658 = vmatprep.mubr.f32.mxu0 0.0
      %659 = vmatmul.mubr.f32.gmra.mrb[0].mxu0 %v592
      %v660 = vpop.f32.mrb[0].mxu0
      %v661 = vadd.f32 0.0, %v660
      %v662 = vpop.f32.mrb[0].mxu0
      %663 = vdwg.mxu0
      %v665 = vsel %vm227, %v586, 0
      %667 = vmatprep.subr.mxu0 0.0
      %668 = vmatpush1.msra.mxu0 %v220
      %669 = vmatprep.subr.mxu0 0.0
      %670 = vmatpush1.msra.mxu0 0.0
      %671 = vmatprep.subr.mxu0 0.0
      %672 = vmatpush1.msra.mxu0 0.0
      %673 = vmatprep.subr.mxu0 0.0
      %674 = vmatpush1.msra.mxu0 0.0
      %675 = vmatprep.subr.mxu0 0.0
      %676 = vmatpush1.msra.mxu0 0.0
      %677 = vmatprep.subr.mxu0 0.0
      %678 = vmatpush1.msra.mxu0 0.0
      %679 = vmatprep.subr.mxu0 0.0
      %680 = vmatpush1.msra.mxu0 0.0
      %681 = vmatprep.subr.mxu0 0.0
      %682 = vmatpush1.msra.mxu0 0.0
      %683 = vmatprep.subr.mxu0 0.0
      %684 = vmatpush1.msra.mxu0 0.0
      %685 = vmatprep.subr.mxu0 0.0
      %686 = vmatpush1.msra.mxu0 0.0
      %687 = vmatprep.subr.mxu0 0.0
      %688 = vmatpush1.msra.mxu0 0.0
      %689 = vmatprep.subr.mxu0 0.0
      %690 = vmatpush1.msra.mxu0 0.0
      %691 = vmatprep.subr.mxu0 0.0
      %692 = vmatpush1.msra.mxu0 0.0
      %693 = vmatprep.subr.mxu0 0.0
      %694 = vmatpush1.msra.mxu0 0.0
      %695 = vmatprep.subr.mxu0 0.0
      %696 = vmatpush1.msra.mxu0 0.0
      %697 = vmatprep.subr.mxu0 0.0
      %698 = vmatpush1.msra.mxu0 0.0
      %699 = vmatprep.subr.mxu0 0.0
      %700 = vmatpush1.msra.mxu0 0.0
      %701 = vmatprep.subr.mxu0 0.0
      %702 = vmatpush1.msra.mxu0 0.0
      %703 = vmatprep.subr.mxu0 0.0
      %704 = vmatpush1.msra.mxu0 0.0
      %705 = vmatprep.subr.mxu0 0.0
      %706 = vmatpush1.msra.mxu0 0.0
      %707 = vmatprep.subr.mxu0 0.0
      %708 = vmatpush1.msra.mxu0 0.0
      %709 = vmatprep.subr.mxu0 0.0
      %710 = vmatpush1.msra.mxu0 0.0
      %711 = vmatprep.subr.mxu0 0.0
      %712 = vmatpush1.msra.mxu0 0.0
      %713 = vmatprep.subr.mxu0 0.0
      %714 = vmatpush1.msra.mxu0 0.0
      %715 = vmatprep.subr.mxu0 0.0
      %716 = vmatpush1.msra.mxu0 0.0
      %717 = vmatprep.subr.mxu0 0.0
      %718 = vmatpush1.msra.mxu0 0.0
      %719 = vmatprep.subr.mxu0 0.0
      %720 = vmatpush1.msra.mxu0 0.0
      %721 = vmatprep.subr.mxu0 0.0
      %722 = vmatpush1.msra.mxu0 0.0
      %723 = vmatprep.subr.mxu0 0.0
      %724 = vmatpush1.msra.mxu0 0.0
      %725 = vmatprep.subr.mxu0 0.0
      %726 = vmatpush1.msra.mxu0 0.0
      %727 = vmatprep.subr.mxu0 0.0
      %728 = vmatpush1.msra.mxu0 0.0
      %729 = vmatprep.subr.mxu0 0.0
      %730 = vmatpush1.msra.mxu0 0.0
      %731 = vmatprep.mubr.f32.mxu0 0.0
      %732 = vmatmul.mubr.f32.gmra.mrb[0].mxu0 %v665
      %v733 = vpop.f32.mrb[0].mxu0
      %v734 = vadd.f32 0.0, %v733
      %v735 = vpop.f32.mrb[0].mxu0
      %736 = vdwg.mxu0
      %v738 = vsel %vm227, %v588, 0
      %740 = vmatprep.subr.mxu0 0.0
      %741 = vmatpush1.msra.mxu0 %v221
      %742 = vmatprep.subr.mxu0 0.0
      %743 = vmatpush1.msra.mxu0 0.0
      %744 = vmatprep.subr.mxu0 0.0
      %745 = vmatpush1.msra.mxu0 0.0
      %746 = vmatprep.subr.mxu0 0.0
      %747 = vmatpush1.msra.mxu0 0.0
      %748 = vmatprep.subr.mxu0 0.0
      %749 = vmatpush1.msra.mxu0 0.0
      %750 = vmatprep.subr.mxu0 0.0
      %751 = vmatpush1.msra.mxu0 0.0
      %752 = vmatprep.subr.mxu0 0.0
      %753 = vmatpush1.msra.mxu0 0.0
      %754 = vmatprep.subr.mxu0 0.0
      %755 = vmatpush1.msra.mxu0 0.0
      %756 = vmatprep.subr.mxu0 0.0
      %757 = vmatpush1.msra.mxu0 0.0
      %758 = vmatprep.subr.mxu0 0.0
      %759 = vmatpush1.msra.mxu0 0.0
      %760 = vmatprep.subr.mxu0 0.0
      %761 = vmatpush1.msra.mxu0 0.0
      %762 = vmatprep.subr.mxu0 0.0
      %763 = vmatpush1.msra.mxu0 0.0
      %764 = vmatprep.subr.mxu0 0.0
      %765 = vmatpush1.msra.mxu0 0.0
      %766 = vmatprep.subr.mxu0 0.0
      %767 = vmatpush1.msra.mxu0 0.0
      %768 = vmatprep.subr.mxu0 0.0
      %769 = vmatpush1.msra.mxu0 0.0
      %770 = vmatprep.subr.mxu0 0.0
      %771 = vmatpush1.msra.mxu0 0.0
      %772 = vmatprep.subr.mxu0 0.0
      %773 = vmatpush1.msra.mxu0 0.0
      %774 = vmatprep.subr.mxu0 0.0
      %775 = vmatpush1.msra.mxu0 0.0
      %776 = vmatprep.subr.mxu0 0.0
      %777 = vmatpush1.msra.mxu0 0.0
      %778 = vmatprep.subr.mxu0 0.0
      %779 = vmatpush1.msra.mxu0 0.0
      %780 = vmatprep.subr.mxu0 0.0
      %781 = vmatpush1.msra.mxu0 0.0
      %782 = vmatprep.subr.mxu0 0.0
      %783 = vmatpush1.msra.mxu0 0.0
      %784 = vmatprep.subr.mxu0 0.0
      %785 = vmatpush1.msra.mxu0 0.0
      %786 = vmatprep.subr.mxu0 0.0
      %787 = vmatpush1.msra.mxu0 0.0
      %788 = vmatprep.subr.mxu0 0.0
      %789 = vmatpush1.msra.mxu0 0.0
      %790 = vmatprep.subr.mxu0 0.0
      %791 = vmatpush1.msra.mxu0 0.0
      %792 = vmatprep.subr.mxu0 0.0
      %793 = vmatpush1.msra.mxu0 0.0
      %794 = vmatprep.subr.mxu0 0.0
      %795 = vmatpush1.msra.mxu0 0.0
      %796 = vmatprep.subr.mxu0 0.0
      %797 = vmatpush1.msra.mxu0 0.0
      %798 = vmatprep.subr.mxu0 0.0
      %799 = vmatpush1.msra.mxu0 0.0
      %800 = vmatprep.subr.mxu0 0.0
      %801 = vmatpush1.msra.mxu0 0.0
      %802 = vmatprep.subr.mxu0 0.0
      %803 = vmatpush1.msra.mxu0 0.0
      %804 = vmatprep.mubr.f32.mxu0 0.0
      %805 = vmatmul.mubr.f32.gmra.mrb[0].mxu0 %v738
      %v806 = vpop.f32.mrb[0].mxu0
      %v807 = vadd.f32 0.0, %v806
      %v808 = vpop.f32.mrb[0].mxu0
      %809 = vdwg.mxu0
      %v811 = vsel %vm227, %v590, 0
      %813 = vmatprep.subr.mxu0 0.0
      %814 = vmatpush1.msra.mxu0 %v222
      %815 = vmatprep.subr.mxu0 0.0
      %816 = vmatpush1.msra.mxu0 0.0
      %817 = vmatprep.subr.mxu0 0.0
      %818 = vmatpush1.msra.mxu0 0.0
      %819 = vmatprep.subr.mxu0 0.0
      %820 = vmatpush1.msra.mxu0 0.0
      %821 = vmatprep.subr.mxu0 0.0
      %822 = vmatpush1.msra.mxu0 0.0
      %823 = vmatprep.subr.mxu0 0.0
      %824 = vmatpush1.msra.mxu0 0.0
      %825 = vmatprep.subr.mxu0 0.0
      %826 = vmatpush1.msra.mxu0 0.0
      %827 = vmatprep.subr.mxu0 0.0
      %828 = vmatpush1.msra.mxu0 0.0
      %829 = vmatprep.subr.mxu0 0.0
      %830 = vmatpush1.msra.mxu0 0.0
      %831 = vmatprep.subr.mxu0 0.0
      %832 = vmatpush1.msra.mxu0 0.0
      %833 = vmatprep.subr.mxu0 0.0
      %834 = vmatpush1.msra.mxu0 0.0
      %835 = vmatprep.subr.mxu0 0.0
      %836 = vmatpush1.msra.mxu0 0.0
      %837 = vmatprep.subr.mxu0 0.0
      %838 = vmatpush1.msra.mxu0 0.0
      %839 = vmatprep.subr.mxu0 0.0
      %840 = vmatpush1.msra.mxu0 0.0
      %841 = vmatprep.subr.mxu0 0.0
      %842 = vmatpush1.msra.mxu0 0.0
      %843 = vmatprep.subr.mxu0 0.0
      %844 = vmatpush1.msra.mxu0 0.0
      %845 = vmatprep.subr.mxu0 0.0
      %846 = vmatpush1.msra.mxu0 0.0
      %847 = vmatprep.subr.mxu0 0.0
      %848 = vmatpush1.msra.mxu0 0.0
      %849 = vmatprep.subr.mxu0 0.0
      %850 = vmatpush1.msra.mxu0 0.0
      %851 = vmatprep.subr.mxu0 0.0
      %852 = vmatpush1.msra.mxu0 0.0
      %853 = vmatprep.subr.mxu0 0.0
      %854 = vmatpush1.msra.mxu0 0.0
      %855 = vmatprep.subr.mxu0 0.0
      %856 = vmatpush1.msra.mxu0 0.0
      %857 = vmatprep.subr.mxu0 0.0
      %858 = vmatpush1.msra.mxu0 0.0
      %859 = vmatprep.subr.mxu0 0.0
      %860 = vmatpush1.msra.mxu0 0.0
      %861 = vmatprep.subr.mxu0 0.0
      %862 = vmatpush1.msra.mxu0 0.0
      %863 = vmatprep.subr.mxu0 0.0
      %864 = vmatpush1.msra.mxu0 0.0
      %865 = vmatprep.subr.mxu0 0.0
      %866 = vmatpush1.msra.mxu0 0.0
      %867 = vmatprep.subr.mxu0 0.0
      %868 = vmatpush1.msra.mxu0 0.0
      %869 = vmatprep.subr.mxu0 0.0
      %870 = vmatpush1.msra.mxu0 0.0
      %871 = vmatprep.subr.mxu0 0.0
      %872 = vmatpush1.msra.mxu0 0.0
      %873 = vmatprep.subr.mxu0 0.0
      %874 = vmatpush1.msra.mxu0 0.0
      %875 = vmatprep.subr.mxu0 0.0
      %876 = vmatpush1.msra.mxu0 0.0
      %877 = vmatprep.mubr.f32.mxu0 0.0
      %878 = vmatmul.mubr.f32.gmra.mrb[0].mxu0 %v811
      %v879 = vpop.f32.mrb[0].mxu0
      %v880 = vadd.f32 0.0, %v879
      %v881 = vpop.f32.mrb[0].mxu0
      %882 = vdwg.mxu0
      %883 = vst.msk [vmem:[%s217] sm:$0xff] %vm227, %v661
      %884 = vst.msk [vmem:[%s217 + $0x8] sm:$0xff] %vm227, %v734
      %885 = vst.msk [vmem:[%s217 + $0x10] sm:$0xff] %vm227, %v807
      %886 = vst.msk [vmem:[%s217 + $0x18] sm:$0xff] %vm227, %v880
      %s887 = smul.u32 4, %s18
      %p888 = scmp.lt.s32.totalorder %s17, 1
      %s889 = scalar_select %p888, %s17, 1
      %p890 = scmp.lt.s32.totalorder %s887, 3
      %s891 = scalar_select %p890, %s887, 3
      %s892 = smul.addr %s889, 4
      %s893 = sadd.s32 %s891, %s892
      %s894 = smul.addr %s893, 8
      %s895 = scalar_lea.vmem %s2, %s894
      // Predicated region
      $region29: #{decoder_layer_forward.5} parent=27 // pred_check
        %p896 = pneg %p101
      $region30: #{decoder_layer_forward.5} parent=27 // pred_check_branch
        %898 = sbr.rel (%p896) target = $region32
      $region31: #{decoder_layer_forward.5} parent=27 // pred_region
        %s899 = smul.u32 4, %s18
      $region32: #{decoder_layer_forward.5} parent=27 // pred_fallthru
        _
    $region28: #{decoder_layer_forward.5} parent=5 // pred_fallthru
      _
    %p900 = scmp.le.s32.totalorder 2, %s8
    // Predicated region
    $region33: #{decoder_layer_forward.5} parent=5 // pred_check
      %p901 = pneg %p900
    $region34: #{decoder_layer_forward.5} parent=5 // pred_check_branch
      %903 = sbr.rel (%p901) target = $region36
    $region35: #{decoder_layer_forward.5} parent=5 // pred_region
      %s904 = ssub.s32 %s8, 2
      // Predicated region
      $region37: #{decoder_layer_forward.5} parent=35 // pred_check
        %p905 = pneg %p107
      $region38: #{decoder_layer_forward.5} parent=35 // pred_check_branch
        %907 = sbr.rel (%p905) target = $region40
      $region39: #{decoder_layer_forward.5} parent=35 // pred_region
        %s908 = smul.u32 4, %s20
        %p909 = scmp.lt.s32.totalorder %s19, 1
        %s910 = scalar_select %p909, %s19, 1
        %p911 = scmp.lt.s32.totalorder %s908, 3
        %s912 = scalar_select %p911, %s908, 3
        %s913 = smul.addr %s910, 4
        %s914 = sadd.s32 %s912, %s913
        %s915 = smul.addr %s914, 8
        %s916 = scalar_lea.vmem %s2, %s915
      $region40: #{decoder_layer_forward.5} parent=35 // pred_fallthru
        _
    $region36: #{decoder_layer_forward.5} parent=5 // pred_fallthru
      _
  $region6: #{decoder_layer_forward.5} parent=0 // loop_footer
    %s12 = sadd.s32 1, %s8
  $region7: #{decoder_layer_forward.5} parent=0 // loop_footer_branch
    %7 = sbr.rel target = $region3
  $region8: #{decoder_layer_forward.5} parent=0 // loop_exit
    _

// kernel: decoder_layer_forward.7
$region0: #{decoder_layer_forward.7}
  #allocation0 [shape = 'u32[]', space=smem, size = 0x4, offset = 0x4, fixed_abs, tag = 'smem constant byte address 0x4 - core index']
  #allocation1 [shape = 'u32[144,128]{1,0:T(1,128)}', space=vmem, size = 0x12000, scoped, tag = 'internal scratch']
  #allocation2 [shape = 'f32[16,32]{1,0:T(8,128)}', space=vmem, size = 0x2000, scoped, tag = 'scratch operand']
  %s0 = inlined_call_operand.vmem [shape: f32[16,32], index: 0, kind: input, shape index: {}]
  %s1 = inlined_call_operand.vmem [shape: f32[32,64], index: 1, kind: input, shape index: {}]
  %s2 = inlined_call_operand.vmem [shape: f32[1,64], index: 2, kind: input, shape index: {}]
  %s3 = inlined_call_operand.vmem [shape: f32[64,32], index: 3, kind: input, shape index: {}]
  %s4 = inlined_call_operand.vmem [shape: f32[1,32], index: 4, kind: input, shape index: {}]
  %s5 = inlined_call_operand.vmem [shape: f32[1,32], index: 5, kind: input, shape index: {}]
  %s6 = inlined_call_operand.vmem [shape: f32[1,32], index: 6, kind: input, shape index: {}]
  %s7 = inlined_call_operand.hbm [shape: f32[16,32], index: 7, kind: output, shape index: {}]
  %s8 = sld [smem:[#allocation0]]
  $region46: #{decoder_layer_forward.7} parent=0
    _
  %s10 = ssub.s32 1, %s8
  %s11 = scalar_select 0, %s10, %s8
  $region1: #{decoder_layer_forward.7} parent=0
    #allocation3 [shape = 'u8[8192]{0}', space=vmem, size = 0x2000, scoped, tag = 'output window, operand 0, single buffered']
    #allocation4 [shape = 's32[1]{0}', space=sflag, size = 0x4, scoped, tag = 'scoped memory for decoder_layer_forward.7']
    %12 = vsyncpa [#allocation4], 0
    // Predicated region
    $region2: #{decoder_layer_forward.7} parent=1 // pred_check
      _
    $region3: #{decoder_layer_forward.7} parent=1 // pred_check_branch
      %14 = sbr.rel (0) target = $region5
    $region4: #{decoder_layer_forward.7} parent=1 // pred_region
      _
    $region5: #{decoder_layer_forward.7} parent=1 // pred_fallthru
      _
    // Predicated region
    $region6: #{decoder_layer_forward.7} parent=1 // pred_check
      _
    $region7: #{decoder_layer_forward.7} parent=1 // pred_check_branch
      %16 = sbr.rel (0) target = $region9
    $region8: #{decoder_layer_forward.7} parent=1 // pred_region
      _
    $region9: #{decoder_layer_forward.7} parent=1 // pred_fallthru
      _
    // Predicated region
    $region10: #{decoder_layer_forward.7} parent=1 // pred_check
      _
    $region11: #{decoder_layer_forward.7} parent=1 // pred_check_branch
      %18 = sbr.rel (0) target = $region13
    $region12: #{decoder_layer_forward.7} parent=1 // pred_region
      _
    $region13: #{decoder_layer_forward.7} parent=1 // pred_fallthru
      _
    // Predicated region
    $region14: #{decoder_layer_forward.7} parent=1 // pred_check
      _
    $region15: #{decoder_layer_forward.7} parent=1 // pred_check_branch
      %20 = sbr.rel (0) target = $region17
    $region16: #{decoder_layer_forward.7} parent=1 // pred_region
      _
    $region17: #{decoder_layer_forward.7} parent=1 // pred_fallthru
      _
    // Predicated region
    $region18: #{decoder_layer_forward.7} parent=1 // pred_check
      _
    $region19: #{decoder_layer_forward.7} parent=1 // pred_check_branch
      %22 = sbr.rel (0) target = $region21
    $region20: #{decoder_layer_forward.7} parent=1 // pred_region
      _
    $region21: #{decoder_layer_forward.7} parent=1 // pred_fallthru
      _
    // Predicated region
    $region22: #{decoder_layer_forward.7} parent=1 // pred_check
      _
    $region23: #{decoder_layer_forward.7} parent=1 // pred_check_branch
      %24 = sbr.rel (0) target = $region25
    $region24: #{decoder_layer_forward.7} parent=1 // pred_region
      _
    $region25: #{decoder_layer_forward.7} parent=1 // pred_fallthru
      _
    // Predicated region
    $region26: #{decoder_layer_forward.7} parent=1 // pred_check
      _
    $region27: #{decoder_layer_forward.7} parent=1 // pred_check_branch
      %26 = sbr.rel (0) target = $region29
    $region28: #{decoder_layer_forward.7} parent=1 // pred_region
      _
    $region29: #{decoder_layer_forward.7} parent=1 // pred_fallthru
      _
    %p27 = scmp.eq.s32.totalorder 0, 0
    // Predicated region
    $region30: #{decoder_layer_forward.7} parent=1 // pred_check
      %p28 = pneg %p27
    $region31: #{decoder_layer_forward.7} parent=1 // pred_check_branch
      %30 = sbr.rel (%p28) target = $region33
    $region32: #{decoder_layer_forward.7} parent=1 // pred_region
      %vm31 = vcmask 261120
      %32 = vst.msk [vmem:[#allocation2] sm:$0xff] %vm31, 0.0
      %33 = vst.msk [vmem:[#allocation2 + $0x8] sm:$0xff] %vm31, 0.0
    $region33: #{decoder_layer_forward.7} parent=1 // pred_fallthru
      _
    %v34 = vld [vmem:[%s0] sm:$0xff]
    %v35 = vld [vmem:[%s0 + $0x8] sm:$0xff]
    %v36 = vld [vmem:[%s1] sm:$0xff]
    %v37 = vld [vmem:[%s1 + $0x8] sm:$0xff]
    %v38 = vld [vmem:[%s1 + $0x10] sm:$0xff]
    %v39 = vld [vmem:[%s1 + $0x18] sm:$0xff]
    %v40 = vld [vmem:[%s2] sm:$0x1]
    %v42 = vlaneseq
    %v43 = vshrl.u32 %v42, 7
    %v44 = vsub.s32 0, %v43
    %v45 = vrot.slane %v40, %v44
    %vm47 = vcmask 261120
    %v49 = vsel %vm47, %v34, 0
    %v52 = vsel %vm47, %v35, 0
    %54 = vmatprep.subr.mxu0 0.0
    %55 = vmatpush1.msra.mxu0 %v36
    %56 = vmatprep.subr.mxu0 0.0
    %57 = vmatpush1.msra.mxu0 %v37
    %58 = vmatprep.subr.mxu0 0.0
    %59 = vmatpush1.msra.mxu0 %v38
    %60 = vmatprep.subr.mxu0 0.0
    %61 = vmatpush1.msra.mxu0 %v39
    %62 = vmatprep.subr.mxu0 0.0
    %63 = vmatpush1.msra.mxu0 0.0
    %64 = vmatprep.subr.mxu0 0.0
    %65 = vmatpush1.msra.mxu0 0.0
    %66 = vmatprep.subr.mxu0 0.0
    %67 = vmatpush1.msra.mxu0 0.0
    %68 = vmatprep.subr.mxu0 0.0
    %69 = vmatpush1.msra.mxu0 0.0
    %70 = vmatprep.subr.mxu0 0.0
    %71 = vmatpush1.msra.mxu0 0.0
    %72 = vmatprep.subr.mxu0 0.0
    %73 = vmatpush1.msra.mxu0 0.0
    %74 = vmatprep.subr.mxu0 0.0
    %75 = vmatpush1.msra.mxu0 0.0
    %76 = vmatprep.subr.mxu0 0.0
    %77 = vmatpush1.msra.mxu0 0.0
    %78 = vmatprep.subr.mxu0 0.0
    %79 = vmatpush1.msra.mxu0 0.0
    %80 = vmatprep.subr.mxu0 0.0
    %81 = vmatpush1.msra.mxu0 0.0
    %82 = vmatprep.subr.mxu0 0.0
    %83 = vmatpush1.msra.mxu0 0.0
    %84 = vmatprep.subr.mxu0 0.0
    %85 = vmatpush1.msra.mxu0 0.0
    %86 = vmatprep.subr.mxu0 0.0
    %87 = vmatpush1.msra.mxu0 0.0
    %88 = vmatprep.subr.mxu0 0.0
    %89 = vmatpush1.msra.mxu0 0.0
    %90 = vmatprep.subr.mxu0 0.0
    %91 = vmatpush1.msra.mxu0 0.0
    %92 = vmatprep.subr.mxu0 0.0
    %93 = vmatpush1.msra.mxu0 0.0
    %94 = vmatprep.subr.mxu0 0.0
    %95 = vmatpush1.msra.mxu0 0.0
    %96 = vmatprep.subr.mxu0 0.0
    %97 = vmatpush1.msra.mxu0 0.0
    %98 = vmatprep.subr.mxu0 0.0
    %99 = vmatpush1.msra.mxu0 0.0
    %100 = vmatprep.subr.mxu0 0.0
    %101 = vmatpush1.msra.mxu0 0.0
    %102 = vmatprep.subr.mxu0 0.0
    %103 = vmatpush1.msra.mxu0 0.0
    %104 = vmatprep.subr.mxu0 0.0
    %105 = vmatpush1.msra.mxu0 0.0
    %106 = vmatprep.subr.mxu0 0.0
    %107 = vmatpush1.msra.mxu0 0.0
    %108 = vmatprep.subr.mxu0 0.0
    %109 = vmatpush1.msra.mxu0 0.0
    %110 = vmatprep.subr.mxu0 0.0
    %111 = vmatpush1.msra.mxu0 0.0
    %112 = vmatprep.subr.mxu0 0.0
    %113 = vmatpush1.msra.mxu0 0.0
    %114 = vmatprep.subr.mxu0 0.0
    %115 = vmatpush1.msra.mxu0 0.0
    %116 = vmatprep.subr.mxu0 0.0
    %117 = vmatpush1.msra.mxu0 0.0
    %118 = vmatprep.mubr.f32.mxu0 0.0
    %119 = vmatmul.mubr.f32.gmra.mrb[0].mxu0 %v49
    %v120 = vpop.f32.mrb[0].mxu0
    %v121 = vadd.f32 %v45, %v120
    %v122 = vpop.f32.mrb[0].mxu0
    %123 = vmatprep.mubr.f32.mxu0 0.0
    %124 = vmatmul.mubr.f32.gmra.mrb[0].mxu0 %v52
    %v125 = vpop.f32.mrb[0].mxu0
    %v126 = vadd.f32 %v45, %v125
    %v127 = vpop.f32.mrb[0].mxu0
    %128 = vdwg.mxu0
    %v129 = vmax.f32 %v121, 0.0
    %v130 = vmax.f32 %v126, 0.0
    %v131 = vld [vmem:[#allocation2] sm:$0xff]
    %v132 = vld [vmem:[#allocation2 + $0x8] sm:$0xff]
    %v133 = vld [vmem:[%s3] sm:$0xff]
    %v134 = vld [vmem:[%s3 + $0x8] sm:$0xff]
    %v135 = vld [vmem:[%s3 + $0x10] sm:$0xff]
    %v136 = vld [vmem:[%s3 + $0x18] sm:$0xff]
    %v137 = vld [vmem:[%s3 + $0x20] sm:$0xff]
    %v138 = vld [vmem:[%s3 + $0x28] sm:$0xff]
    %v139 = vld [vmem:[%s3 + $0x30] sm:$0xff]
    %v140 = vld [vmem:[%s3 + $0x38] sm:$0xff]
    %vm141 = vcmask 523264
    %v143 = vsel %vm141, %v129, 0
    %v146 = vsel %vm141, %v130, 0
    %148 = vmatprep.subr.mxu0 0.0
    %149 = vmatpush1.msra.mxu0 %v133
    %150 = vmatprep.subr.mxu0 0.0
    %151 = vmatpush1.msra.mxu0 %v134
    %152 = vmatprep.subr.mxu0 0.0
    %153 = vmatpush1.msra.mxu0 %v135
    %154 = vmatprep.subr.mxu0 0.0
    %155 = vmatpush1.msra.mxu0 %v136
    %156 = vmatprep.subr.mxu0 0.0
    %157 = vmatpush1.msra.mxu0 %v137
    %158 = vmatprep.subr.mxu0 0.0
    %159 = vmatpush1.msra.mxu0 %v138
    %160 = vmatprep.subr.mxu0 0.0
    %161 = vmatpush1.msra.mxu0 %v139
    %162 = vmatprep.subr.mxu0 0.0
    %163 = vmatpush1.msra.mxu0 %v140
    %164 = vmatprep.subr.mxu0 0.0
    %165 = vmatpush1.msra.mxu0 0.0
    %166 = vmatprep.subr.mxu0 0.0
    %167 = vmatpush1.msra.mxu0 0.0
    %168 = vmatprep.subr.mxu0 0.0
    %169 = vmatpush1.msra.mxu0 0.0
    %170 = vmatprep.subr.mxu0 0.0
    %171 = vmatpush1.msra.mxu0 0.0
    %172 = vmatprep.subr.mxu0 0.0
    %173 = vmatpush1.msra.mxu0 0.0
    %174 = vmatprep.subr.mxu0 0.0
    %175 = vmatpush1.msra.mxu0 0.0
    %176 = vmatprep.subr.mxu0 0.0
    %177 = vmatpush1.msra.mxu0 0.0
    %178 = vmatprep.subr.mxu0 0.0
    %179 = vmatpush1.msra.mxu0 0.0
    %180 = vmatprep.subr.mxu0 0.0
    %181 = vmatpush1.msra.mxu0 0.0
    %182 = vmatprep.subr.mxu0 0.0
    %183 = vmatpush1.msra.mxu0 0.0
    %184 = vmatprep.subr.mxu0 0.0
    %185 = vmatpush1.msra.mxu0 0.0
    %186 = vmatprep.subr.mxu0 0.0
    %187 = vmatpush1.msra.mxu0 0.0
    %188 = vmatprep.subr.mxu0 0.0
    %189 = vmatpush1.msra.mxu0 0.0
    %190 = vmatprep.subr.mxu0 0.0
    %191 = vmatpush1.msra.mxu0 0.0
    %192 = vmatprep.subr.mxu0 0.0
    %193 = vmatpush1.msra.mxu0 0.0
    %194 = vmatprep.subr.mxu0 0.0
    %195 = vmatpush1.msra.mxu0 0.0
    %196 = vmatprep.subr.mxu0 0.0
    %197 = vmatpush1.msra.mxu0 0.0
    %198 = vmatprep.subr.mxu0 0.0
    %199 = vmatpush1.msra.mxu0 0.0
    %200 = vmatprep.subr.mxu0 0.0
    %201 = vmatpush1.msra.mxu0 0.0
    %202 = vmatprep.subr.mxu0 0.0
    %203 = vmatpush1.msra.mxu0 0.0
    %204 = vmatprep.subr.mxu0 0.0
    %205 = vmatpush1.msra.mxu0 0.0
    %206 = vmatprep.subr.mxu0 0.0
    %207 = vmatpush1.msra.mxu0 0.0
    %208 = vmatprep.subr.mxu0 0.0
    %209 = vmatpush1.msra.mxu0 0.0
    %210 = vmatprep.subr.mxu0 0.0
    %211 = vmatpush1.msra.mxu0 0.0
    %212 = vmatprep.mubr.f32.mxu0 0.0
    %213 = vmatmul.mubr.f32.gmra.mrb[0].mxu0 %v143
    %v214 = vpop.f32.mrb[0].mxu0
    %v215 = vadd.f32 0.0, %v214
    %v216 = vpop.f32.mrb[0].mxu0
    %217 = vmatprep.mubr.f32.mxu0 0.0
    %218 = vmatmul.mubr.f32.gmra.mrb[0].mxu0 %v146
    %v219 = vpop.f32.mrb[0].mxu0
    %v220 = vadd.f32 0.0, %v219
    %v221 = vpop.f32.mrb[0].mxu0
    %222 = vdwg.mxu0
    %v223 = vadd.f32 %v131, %v215
    %v224 = vadd.f32 %v132, %v220
    %225 = vst.msk [vmem:[#allocation2] sm:$0xff] %vm47, %v223
    %226 = vst.msk [vmem:[#allocation2 + $0x8] sm:$0xff] %vm47, %v224
    // Predicated region
    $region34: #{decoder_layer_forward.7} parent=1 // pred_check
      %p227 = pneg %p27
    $region35: #{decoder_layer_forward.7} parent=1 // pred_check_branch
      %229 = sbr.rel (%p227) target = $region37
    $region36: #{decoder_layer_forward.7} parent=1 // pred_region
      %v230 = vld [vmem:[#allocation2] sm:$0xff]
      %v231 = vld [vmem:[#allocation2 + $0x8] sm:$0xff]
      %v232 = vld [vmem:[%s4] sm:$0x1]
      %v234 = vlaneseq
      %v235 = vshrl.u32 %v234, 7
      %v236 = vsub.s32 0, %v235
      %v237 = vrot.slane %v232, %v236
      %v239 = vadd.f32 %v230, %v237
      %v240 = vadd.f32 %v231, %v237
      %v241 = vld [vmem:[%s0] sm:$0xff]
      %v242 = vld [vmem:[%s0 + $0x8] sm:$0xff]
      %v243 = vadd.f32 %v241, %v239
      %v244 = vadd.f32 %v242, %v240
      %v245 = vsel %vm47, %v243, 0.0
      %246 = vadd.xlane.f32.xlu0 %v245
      %v247 = vpop.xlane.xlu0 %246
      %v248 = vsel %vm47, %v244, 0.0
      %249 = vadd.xlane.f32.xlu0 %v248
      %v250 = vpop.xlane.xlu0 %249
      %v251 = vrcp.pop 32.0
      %v252 = vmul.f32 %v247, %v251
      %v253 = vmul.f32 %v250, %v251
      %v254 = vsub.f32 %v243, %v252
      %v255 = vsub.f32 %v244, %v253
      %v256 = vmul.f32 %v254, %v254
      %v257 = vmul.f32 %v255, %v255
      %v258 = vsel %vm47, %v256, 0.0
      %259 = vadd.xlane.f32.xlu0 %v258
      %v260 = vpop.xlane.xlu0 %259
      %v261 = vsel %vm47, %v257, 0.0
      %262 = vadd.xlane.f32.xlu0 %v261
      %v263 = vpop.xlane.xlu0 %262
      %v264 = vmul.f32 %v260, %v251
      %v265 = vmul.f32 %v263, %v251
      %v266 = vadd.f32 %v264, 1e-05
      %v267 = vadd.f32 %v265, 1e-05
      %v268 = vrsqrt.pop %v266
      %v269 = vrsqrt.pop %v267
      %v270 = vmul.f32 %v254, %v268
      %v271 = vmul.f32 %v255, %v269
      %v272 = vld [vmem:[%s5] sm:$0x1]
      %v274 = vlaneseq
      %v275 = vshrl.u32 %v274, 7
      %v276 = vsub.s32 0, %v275
      %v277 = vrot.slane %v272, %v276
      %v279 = vmul.f32 %v270, %v277
      %v280 = vmul.f32 %v271, %v277
      %v281 = vld [vmem:[%s6] sm:$0x1]
      %v283 = vlaneseq
      %v284 = vshrl.u32 %v283, 7
      %v285 = vsub.s32 0, %v284
      %v286 = vrot.slane %v281, %v285
      %v288 = vadd.f32 %v279, %v286
      %v289 = vadd.f32 %v280, %v286
      %290 = vst.msk [vmem:[#allocation3] sm:$0xff] %vm47, %v288
      %291 = vst.msk [vmem:[#allocation3 + $0x8] sm:$0xff] %vm47, %v289
    $region37: #{decoder_layer_forward.7} parent=1 // pred_fallthru
      _
    // Predicated region
    $region38: #{decoder_layer_forward.7} parent=1 // pred_check
      _
    $region39: #{decoder_layer_forward.7} parent=1 // pred_check_branch
      %293 = sbr.rel (0) target = $region41
    $region40: #{decoder_layer_forward.7} parent=1 // pred_region
      %s295 = ssub.s32 256, 256
      %296 = vsyncadd [#allocation4], %s295
      %s297 = sshll.u32 [#allocation3], 4
      %s298 = int_to_ptr.vmem [resolvable:$true] %s297
      %303 = dma.vmem_to_hbm [thread:$0]  %s298, 256, %s7, [#allocation4], 128, 128, 8
    $region41: #{decoder_layer_forward.7} parent=1 // pred_fallthru
      _
    // Predicated region
    $region42: #{decoder_layer_forward.7} parent=1 // pred_check
      _
    $region43: #{decoder_layer_forward.7} parent=1 // pred_check_branch
      %305 = sbr.rel (0) target = $region45
    $region44: #{decoder_layer_forward.7} parent=1 // pred_region
      %306 = dma.done [#allocation4], 256
    $region45: #{decoder_layer_forward.7} parent=1 // pred_fallthru
      _
    %307 = vsyncpa [#allocation4], 1

// kernel: decoder_layer_forward.6
$region0: #{decoder_layer_forward.6}
  #allocation0 [shape = 'u32[]', space=smem, size = 0x4, offset = 0x4, fixed_abs, tag = 'smem constant byte address 0x4 - core index']
  #allocation1 [shape = 'u32[144,128]{1,0:T(1,128)}', space=vmem, size = 0x12000, scoped, tag = 'internal scratch']
  %s0 = inlined_call_operand.vmem [shape: f32[16,32], index: 0, kind: input, shape index: {}]
  %s1 = inlined_call_operand.vmem [shape: f32[32,32], index: 1, kind: input, shape index: {}]
  %s2 = inlined_call_operand.vmem [shape: f32[1,32], index: 2, kind: input, shape index: {}]
  %s3 = inlined_call_operand.vmem [shape: f32[16,32], index: 3, kind: input, shape index: {}]
  %s4 = inlined_call_operand.vmem [shape: f32[1,32], index: 4, kind: input, shape index: {}]
  %s5 = inlined_call_operand.vmem [shape: f32[1,32], index: 5, kind: input, shape index: {}]
  %s6 = inlined_call_operand.vmem [shape: f32[16,32], index: 6, kind: output, shape index: {}]
  %s7 = sld [smem:[#allocation0]]
  $region34: #{decoder_layer_forward.6} parent=0
    _
  %s9 = ssub.s32 1, %s7
  %s10 = scalar_select 0, %s9, %s7
  // Predicated region
  $region2: #{decoder_layer_forward.6} parent=0 // pred_check
    _
  $region3: #{decoder_layer_forward.6} parent=0 // pred_check_branch
    %12 = sbr.rel (0) target = $region5
  $region4: #{decoder_layer_forward.6} parent=0 // pred_region
    _
  $region5: #{decoder_layer_forward.6} parent=0 // pred_fallthru
    _
  // Predicated region
  $region6: #{decoder_layer_forward.6} parent=0 // pred_check
    _
  $region7: #{decoder_layer_forward.6} parent=0 // pred_check_branch
    %14 = sbr.rel (0) target = $region9
  $region8: #{decoder_layer_forward.6} parent=0 // pred_region
    _
  $region9: #{decoder_layer_forward.6} parent=0 // pred_fallthru
    _
  // Predicated region
  $region10: #{decoder_layer_forward.6} parent=0 // pred_check
    _
  $region11: #{decoder_layer_forward.6} parent=0 // pred_check_branch
    %16 = sbr.rel (0) target = $region13
  $region12: #{decoder_layer_forward.6} parent=0 // pred_region
    _
  $region13: #{decoder_layer_forward.6} parent=0 // pred_fallthru
    _
  // Predicated region
  $region14: #{decoder_layer_forward.6} parent=0 // pred_check
    _
  $region15: #{decoder_layer_forward.6} parent=0 // pred_check_branch
    %18 = sbr.rel (0) target = $region17
  $region16: #{decoder_layer_forward.6} parent=0 // pred_region
    _
  $region17: #{decoder_layer_forward.6} parent=0 // pred_fallthru
    _
  // Predicated region
  $region18: #{decoder_layer_forward.6} parent=0 // pred_check
    _
  $region19: #{decoder_layer_forward.6} parent=0 // pred_check_branch
    %20 = sbr.rel (0) target = $region21
  $region20: #{decoder_layer_forward.6} parent=0 // pred_region
    _
  $region21: #{decoder_layer_forward.6} parent=0 // pred_fallthru
    _
  // Predicated region
  $region22: #{decoder_layer_forward.6} parent=0 // pred_check
    _
  $region23: #{decoder_layer_forward.6} parent=0 // pred_check_branch
    %22 = sbr.rel (0) target = $region25
  $region24: #{decoder_layer_forward.6} parent=0 // pred_region
    _
  $region25: #{decoder_layer_forward.6} parent=0 // pred_fallthru
    _
  %v23 = vld [vmem:[%s0] sm:$0xff]
  %v24 = vld [vmem:[%s0 + $0x8] sm:$0xff]
  %v25 = vld [vmem:[%s1] sm:$0xff]
  %v26 = vld [vmem:[%s1 + $0x8] sm:$0xff]
  %v27 = vld [vmem:[%s1 + $0x10] sm:$0xff]
  %v28 = vld [vmem:[%s1 + $0x18] sm:$0xff]
  %v29 = vld [vmem:[%s2] sm:$0x1]
  %v31 = vlaneseq
  %v32 = vshrl.u32 %v31, 7
  %v33 = vsub.s32 0, %v32
  %v34 = vrot.slane %v29, %v33
  %vm36 = vcmask 261120
  %v38 = vsel %vm36, %v23, 0
  %v41 = vsel %vm36, %v24, 0
  %43 = vmatprep.subr.mxu0 0.0
  %44 = vmatpush1.msra.mxu0 %v25
  %45 = vmatprep.subr.mxu0 0.0
  %46 = vmatpush1.msra.mxu0 %v26
  %47 = vmatprep.subr.mxu0 0.0
  %48 = vmatpush1.msra.mxu0 %v27
  %49 = vmatprep.subr.mxu0 0.0
  %50 = vmatpush1.msra.mxu0 %v28
  %51 = vmatprep.subr.mxu0 0.0
  %52 = vmatpush1.msra.mxu0 0.0
  %53 = vmatprep.subr.mxu0 0.0
  %54 = vmatpush1.msra.mxu0 0.0
  %55 = vmatprep.subr.mxu0 0.0
  %56 = vmatpush1.msra.mxu0 0.0
  %57 = vmatprep.subr.mxu0 0.0
  %58 = vmatpush1.msra.mxu0 0.0
  %59 = vmatprep.subr.mxu0 0.0
  %60 = vmatpush1.msra.mxu0 0.0
  %61 = vmatprep.subr.mxu0 0.0
  %62 = vmatpush1.msra.mxu0 0.0
  %63 = vmatprep.subr.mxu0 0.0
  %64 = vmatpush1.msra.mxu0 0.0
  %65 = vmatprep.subr.mxu0 0.0
  %66 = vmatpush1.msra.mxu0 0.0
  %67 = vmatprep.subr.mxu0 0.0
  %68 = vmatpush1.msra.mxu0 0.0
  %69 = vmatprep.subr.mxu0 0.0
  %70 = vmatpush1.msra.mxu0 0.0
  %71 = vmatprep.subr.mxu0 0.0
  %72 = vmatpush1.msra.mxu0 0.0
  %73 = vmatprep.subr.mxu0 0.0
  %74 = vmatpush1.msra.mxu0 0.0
  %75 = vmatprep.subr.mxu0 0.0
  %76 = vmatpush1.msra.mxu0 0.0
  %77 = vmatprep.subr.mxu0 0.0
  %78 = vmatpush1.msra.mxu0 0.0
  %79 = vmatprep.subr.mxu0 0.0
  %80 = vmatpush1.msra.mxu0 0.0
  %81 = vmatprep.subr.mxu0 0.0
  %82 = vmatpush1.msra.mxu0 0.0
  %83 = vmatprep.subr.mxu0 0.0
  %84 = vmatpush1.msra.mxu0 0.0
  %85 = vmatprep.subr.mxu0 0.0
  %86 = vmatpush1.msra.mxu0 0.0
  %87 = vmatprep.subr.mxu0 0.0
  %88 = vmatpush1.msra.mxu0 0.0
  %89 = vmatprep.subr.mxu0 0.0
  %90 = vmatpush1.msra.mxu0 0.0
  %91 = vmatprep.subr.mxu0 0.0
  %92 = vmatpush1.msra.mxu0 0.0
  %93 = vmatprep.subr.mxu0 0.0
  %94 = vmatpush1.msra.mxu0 0.0
  %95 = vmatprep.subr.mxu0 0.0
  %96 = vmatpush1.msra.mxu0 0.0
  %97 = vmatprep.subr.mxu0 0.0
  %98 = vmatpush1.msra.mxu0 0.0
  %99 = vmatprep.subr.mxu0 0.0
  %100 = vmatpush1.msra.mxu0 0.0
  %101 = vmatprep.subr.mxu0 0.0
  %102 = vmatpush1.msra.mxu0 0.0
  %103 = vmatprep.subr.mxu0 0.0
  %104 = vmatpush1.msra.mxu0 0.0
  %105 = vmatprep.subr.mxu0 0.0
  %106 = vmatpush1.msra.mxu0 0.0
  %107 = vmatprep.mubr.f32.mxu0 0.0
  %108 = vmatmul.mubr.f32.gmra.mrb[0].mxu0 %v38
  %v109 = vpop.f32.mrb[0].mxu0
  %v110 = vadd.f32 %v34, %v109
  %v111 = vpop.f32.mrb[0].mxu0
  %112 = vmatprep.mubr.f32.mxu0 0.0
  %113 = vmatmul.mubr.f32.gmra.mrb[0].mxu0 %v41
  %v114 = vpop.f32.mrb[0].mxu0
  %v115 = vadd.f32 %v34, %v114
  %v116 = vpop.f32.mrb[0].mxu0
  %117 = vdwg.mxu0
  %v118 = vld [vmem:[%s3] sm:$0xff]
  %v119 = vld [vmem:[%s3 + $0x8] sm:$0xff]
  %v120 = vadd.f32 %v118, %v110
  %v121 = vadd.f32 %v119, %v115
  %v122 = vsel %vm36, %v120, 0.0
  %123 = vadd.xlane.f32.xlu0 %v122
  %v124 = vpop.xlane.xlu0 %123
  %v125 = vsel %vm36, %v121, 0.0
  %126 = vadd.xlane.f32.xlu0 %v125
  %v127 = vpop.xlane.xlu0 %126
  %v128 = vrcp.pop 32.0
  %v129 = vmul.f32 %v124, %v128
  %v130 = vmul.f32 %v127, %v128
  %v131 = vsub.f32 %v120, %v129
  %v132 = vsub.f32 %v121, %v130
  %v133 = vmul.f32 %v131, %v131
  %v134 = vmul.f32 %v132, %v132
  %v135 = vsel %vm36, %v133, 0.0
  %136 = vadd.xlane.f32.xlu0 %v135
  %v137 = vpop.xlane.xlu0 %136
  %v138 = vsel %vm36, %v134, 0.0
  %139 = vadd.xlane.f32.xlu0 %v138
  %v140 = vpop.xlane.xlu0 %139
  %v141 = vmul.f32 %v137, %v128
  %v142 = vmul.f32 %v140, %v128
  %v143 = vadd.f32 %v141, 1e-05
  %v144 = vadd.f32 %v142, 1e-05
  %v145 = vrsqrt.pop %v143
  %v146 = vrsqrt.pop %v144
  %v147 = vmul.f32 %v131, %v145
  %v148 = vmul.f32 %v132, %v146
  %v149 = vld [vmem:[%s4] sm:$0x1]
  %v151 = vlaneseq
  %v152 = vshrl.u32 %v151, 7
  %v153 = vsub.s32 0, %v152
  %v154 = vrot.slane %v149, %v153
  %v156 = vmul.f32 %v147, %v154
  %v157 = vmul.f32 %v148, %v154
  %v158 = vld [vmem:[%s5] sm:$0x1]
  %v160 = vlaneseq
  %v161 = vshrl.u32 %v160, 7
  %v162 = vsub.s32 0, %v161
  %v163 = vrot.slane %v158, %v162
  %v165 = vadd.f32 %v156, %v163
  %v166 = vadd.f32 %v157, %v163
  %167 = vst.msk [vmem:[%s6] sm:$0xff] %vm36, %v165
  %168 = vst.msk [vmem:[%s6 + $0x8] sm:$0xff] %vm36, %v166
  // Predicated region
  $region26: #{decoder_layer_forward.6} parent=0 // pred_check
    _
  $region27: #{decoder_layer_forward.6} parent=0 // pred_check_branch
    %170 = sbr.rel (0) target = $region29
  $region28: #{decoder_layer_forward.6} parent=0 // pred_region
    _
  $region29: #{decoder_layer_forward.6} parent=0 // pred_fallthru
    _
  // Predicated region
  $region30: #{decoder_layer_forward.6} parent=0 // pred_check
    _
  $region31: #{decoder_layer_forward.6} parent=0 // pred_check_branch
    %172 = sbr.rel (0) target = $region33
  $region32: #{decoder_layer_forward.6} parent=0 // pred_region
    _
  $region33: #{decoder_layer_forward.6} parent=0 // pred_fallthru
    _

</llo_original>
